<compile_context>
chip_gen: v7x
topology: tpu7x:2x2x1
jax: 0.10.0
libtpu: 0.0.40
codegen_flags: <defaults>
</compile_context>

<pallas_src>
import functools
import math

import jax
import jax.numpy as jnp
from jax.experimental import pallas as pl
from jax.experimental.pallas import tpu as pltpu


def _layernorm(z, gamma, beta, eps=1e-5):
    mu = jnp.mean(z, axis=-1, keepdims=True)
    var = jnp.mean((z - mu) ** 2, axis=-1, keepdims=True)
    return (z - mu) * jax.lax.rsqrt(var + eps) * gamma + beta


def transformer_block_kernel(
    x_ref,        # (S, E)   one batch element                 (f32)
    w_in_t_ref,   # (E, 3E)  in_proj weight, transposed        (bf16)
    b_in_ref,     # (1, 3E)  in_proj bias                      (f32)
    w_out_t_ref,  # (E, E)   out_proj weight, transposed       (bf16)
    w1_t_ref,     # (E, F)   FF linear1 weight, transposed     (bf16)
    b1_ref,       # (1, F)   FF linear1 bias                   (f32)
    w2_t_ref,     # (F, E)   FF linear2 weight, transposed     (bf16)
    vecs_ref,     # (6, E)   [b_out, g1, be1, b2, g2, be2]     (f32)
    o_ref,        # (S, E)   output
    ctx_ref,      # (S, E)   f32 VMEM scratch: per-head attention context
    *,
    num_heads: int,
):
    f32 = jnp.float32
    bf16 = jnp.bfloat16

    x = x_ref[...].astype(f32)                               # (S, E)
    S, E = x.shape
    H = num_heads
    D = E // H
    scale = 1.0 / math.sqrt(D)

    vecs = vecs_ref[...]                                     # (6, E) f32
    b_out, g1, be1 = vecs[0:1, :], vecs[1:2, :], vecs[2:3, :]
    b2, g2, be2 = vecs[3:4, :], vecs[4:5, :], vecs[5:6, :]

    # ---- QKV projection: bf16 MXU operands, f32 accumulation ---------------
    qkv = jnp.dot(x.astype(bf16), w_in_t_ref[...],
                  preferred_element_type=f32) + b_in_ref[...]  # (S, 3E) f32
    q = qkv[:, 0 * E:1 * E] * scale
    k = qkv[:, 1 * E:2 * E]
    v = qkv[:, 2 * E:3 * E]

    # ---- per-head attention; contexts written straight into one (S, E)
    #      VMEM scratch (no lane-axis concatenate, short live ranges) --------
    # TODO(synk): for large S, switch to a flash-style K/V tile loop so the
    # (S, S) score matrix never fully materializes.
    for h in range(H):                                       # static unroll
        sl = slice(h * D, (h + 1) * D)
        qh = q[:, sl].astype(bf16)                           # (S, D)
        kh = k[:, sl].astype(bf16)
        vh = v[:, sl].astype(bf16)
        s = jnp.einsum("qd,kd->qk", qh, kh,
                       preferred_element_type=f32)           # (S, S) f32
        s = s - jnp.max(s, axis=-1, keepdims=True)
        p = jnp.exp(s)                                       # f32 softmax
        p = p * pl.reciprocal(jnp.sum(p, axis=-1, keepdims=True), approx=True)
        ctx_ref[:, sl] = jnp.dot(p.astype(bf16), vh,
                                 preferred_element_type=f32)

    # ---- output projection over all heads at once (full-K MXU matmul) ------
    attn = jnp.dot(ctx_ref[...].astype(bf16), w_out_t_ref[...],
                   preferred_element_type=f32) + b_out       # (S, E) f32

    # ---- residual + norm1 (f32 VPU/EUP) -------------------------------------
    y = _layernorm(x + attn, g1, be1)

    # ---- feed forward -------------------------------------------------------
    # TODO(synk): at large F, tile the FF matmuls over F with an extra grid
    # axis + f32 accumulator so resident weights stay within v7x's 64 MiB VMEM.
    h1 = jnp.dot(y.astype(bf16), w1_t_ref[...], preferred_element_type=f32)
    h1 = jnp.maximum(h1 + b1_ref[...], 0.0)                  # (S, F) ReLU
    ff = jnp.dot(h1.astype(bf16), w2_t_ref[...],
                 preferred_element_type=f32) + b2

    # ---- residual + norm2 ---------------------------------------------------
    o_ref[...] = _layernorm(y + ff, g2, be2).astype(o_ref.dtype)


@functools.partial(jax.jit, static_argnames=("num_heads",))
def transformer_block(x, params, num_heads):
    """x: (S, B, E) as in PyTorch nn.MultiheadAttention (batch_first=False)."""
    S, B, E = x.shape
    F = params["w1_t"].shape[1]
    H = num_heads
    assert E % H == 0

    # Free reshape: batch element b occupies lane-dense columns [b*E:(b+1)*E].
    x2 = x.reshape(S, B * E)

    vecs = jnp.concatenate(
        [params["b_out"], params["g1"], params["be1"],
         params["b2"], params["g2"], params["be2"]], axis=0)   # (6, E) f32

    weights = [params["w_in_t"], params["b_in"], params["w_out_t"],
               params["w1_t"], params["b1"], params["w2_t"], vecs]

    # Advisory cost estimate so XLA schedules surrounding ops sensibly.
    flops = 2 * B * S * (4 * E * E + 2 * S * E + 2 * E * F)
    transcendentals = B * H * S * S
    bytes_accessed = (2 * 4 * S * B * E                 # activations in + out
                      + 2 * (4 * E * E + 2 * E * F)     # bf16 weights
                      + 4 * (9 * E + F))                # f32 bias / LN vectors

    # VMEM budget: resident bf16 weights + double-buffered (S, E) activation
    # blocks + f32 context scratch, with margin; clamped to stay safe on v7x.
    needed = (2 * (4 * E * E + 2 * E * F) + 4 * (9 * E + F)
              + 4 * 4 * S * E + 4 * S * E)
    vmem_limit = int(min(max(4 * needed, 32 * 1024 * 1024), 48 * 1024 * 1024))

    out = pl.pallas_call(
        functools.partial(transformer_block_kernel, num_heads=num_heads),
        grid=(B,),
        in_specs=[pl.BlockSpec((S, E), lambda b: (0, b))]
                 + [pl.BlockSpec(w.shape, lambda b: (0, 0)) for w in weights],
        out_specs=pl.BlockSpec((S, E), lambda b: (0, b)),
        out_shape=jax.ShapeDtypeStruct((S, B * E), x.dtype),
        scratch_shapes=[pltpu.VMEM((S, E), jnp.float32)],
        compiler_params=pltpu.CompilerParams(
            dimension_semantics=("parallel",),
            vmem_limit_bytes=vmem_limit),
        cost_estimate=pl.CostEstimate(flops=flops,
                                      transcendentals=transcendentals,
                                      bytes_accessed=bytes_accessed),
    )(x2, *weights)

    return out.reshape(S, B, E)


def init_params(key, embed_size, feed_forward_size):
    E, F = embed_size, feed_forward_size
    ks = jax.random.split(key, 8)
    std = 0.05
    bf16 = jnp.bfloat16
    return {
        # nn.MultiheadAttention in_proj_weight (3E, E) -> stored transposed, bf16
        "w_in_t": (jax.random.normal(ks[0], (E, 3 * E), jnp.float32) * std).astype(bf16),
        "b_in":   jax.random.normal(ks[1], (1, 3 * E), jnp.float32) * std,
        # out_proj (E, E) -> transposed, bf16
        "w_out_t": (jax.random.normal(ks[2], (E, E), jnp.float32) * std).astype(bf16),
        "b_out":   jax.random.normal(ks[3], (1, E), jnp.float32) * std,
        # LayerNorm 1
        "g1":  jnp.ones((1, E), jnp.float32),
        "be1": jnp.zeros((1, E), jnp.float32),
        # FF linear 1: (F, E) -> transposed (E, F), bf16
        "w1_t": (jax.random.normal(ks[4], (E, F), jnp.float32) * std).astype(bf16),
        "b1":   jax.random.normal(ks[5], (1, F), jnp.float32) * std,
        # FF linear 2: (E, F) -> transposed (F, E), bf16
        "w2_t": (jax.random.normal(ks[6], (F, E), jnp.float32) * std).astype(bf16),
        "b2":   jax.random.normal(ks[7], (1, E), jnp.float32) * std,
        # LayerNorm 2
        "g2":  jnp.ones((1, E), jnp.float32),
        "be2": jnp.zeros((1, E), jnp.float32),
    }


def reference_transformer_block(x, params, num_heads):
    """Pure-JAX reference mirroring the kernel's bf16-MXU / f32-VPU math."""
    f32, bf16 = jnp.float32, jnp.bfloat16
    S, B, E = x.shape
    H = num_heads
    D = E // H
    scale = 1.0 / math.sqrt(D)

    xb = jnp.transpose(x, (1, 0, 2)).astype(f32)             # (B, S, E)
    qkv = jnp.einsum("bse,ef->bsf", xb.astype(bf16), params["w_in_t"],
                     preferred_element_type=f32) + params["b_in"]
    q = qkv[..., 0 * E:1 * E] * scale
    k = qkv[..., 1 * E:2 * E]
    v = qkv[..., 2 * E:3 * E]

    def split_heads(t):                                      # (B,S,E)->(B,H,S,D)
        return t.reshape(B, S, H, D).transpose(0, 2, 1, 3).astype(bf16)

    qh, kh, vh = split_heads(q), split_heads(k), split_heads(v)
    s = jnp.einsum("bhqd,bhkd->bhqk", qh, kh, preferred_element_type=f32)
    p = jax.nn.softmax(s, axis=-1)
    ctx = jnp.einsum("bhqk,bhkd->bhqd", p.astype(bf16), vh,
                     preferred_element_type=f32)
    ctx = ctx.transpose(0, 2, 1, 3).reshape(B, S, E)
    attn = jnp.einsum("bse,ef->bsf", ctx.astype(bf16), params["w_out_t"],
                      preferred_element_type=f32) + params["b_out"]

    y = _layernorm(xb + attn, params["g1"], params["be1"])
    h1 = jnp.maximum(jnp.einsum("bse,ef->bsf", y.astype(bf16), params["w1_t"],
                                preferred_element_type=f32) + params["b1"], 0.0)
    ff = jnp.einsum("bsf,fe->bse", h1.astype(bf16), params["w2_t"],
                    preferred_element_type=f32) + params["b2"]
    out = _layernorm(y + ff, params["g2"], params["be2"])
    return jnp.transpose(out, (1, 0, 2))                     # back to (S, B, E)


if __name__ == "__main__":
    # Small but TPU-friendly shapes (E a multiple of 128 lanes, S multiple of 8).
    SEQ, BATCH, EMBED, HEADS, FF = 16, 2, 128, 4, 256

    key = jax.random.PRNGKey(0)
    kx, kp = jax.random.split(key)
    x = jax.random.normal(kx, (SEQ, BATCH, EMBED), jnp.float32)
    params = init_params(kp, EMBED, FF)

    out = transformer_block(x, params, num_heads=HEADS)
    out = jax.block_until_ready(out)

    ref = reference_transformer_block(x, params, HEADS)
    assert out.shape == (SEQ, BATCH, EMBED)
    max_err = float(jnp.max(jnp.abs(out - ref)))
    assert jnp.allclose(out, ref, atol=1e-2, rtol=1e-2), \
        f"mismatch vs JAX reference (max |err| = {max_err})"

    print("KERNEL_OK")
</pallas_src>

<mosaic_0001>
module attributes {stable_mosaic.version = 11 : i64} {
  func.func @transformer_block_kernel(%arg0: i32, %arg1: memref<16x128xf32, #tpu.memory_space<vmem>>, %arg2: memref<128x384xbf16, #tpu.memory_space<vmem>>, %arg3: memref<1x384xf32, #tpu.memory_space<vmem>>, %arg4: memref<128x128xbf16, #tpu.memory_space<vmem>>, %arg5: memref<128x256xbf16, #tpu.memory_space<vmem>>, %arg6: memref<1x256xf32, #tpu.memory_space<vmem>>, %arg7: memref<256x128xbf16, #tpu.memory_space<vmem>>, %arg8: memref<6x128xf32, #tpu.memory_space<vmem>>, %arg9: memref<16x128xf32, #tpu.memory_space<vmem>>, %arg10: memref<16x128xf32, #tpu.memory_space<vmem>>) attributes {dimension_semantics = [#tpu.dimension_semantics<parallel>], iteration_bounds = array<i64: 2>, scalar_prefetch = 0 : i64, scratch_operands = 1 : i64, tpu.core_type = #tpu.core_type<tc>, window_params = [{transform_indices = @transform_0, window_bounds = array<i64: 16, 128>}, {pipeline_mode = #tpu.pipeline_mode<synchronous>, transform_indices = @transform_1, window_bounds = array<i64: 128, 384>}, {pipeline_mode = #tpu.pipeline_mode<synchronous>, transform_indices = @transform_2, window_bounds = array<i64: 1, 384>}, {pipeline_mode = #tpu.pipeline_mode<synchronous>, transform_indices = @transform_3, window_bounds = array<i64: 128, 128>}, {pipeline_mode = #tpu.pipeline_mode<synchronous>, transform_indices = @transform_4, window_bounds = array<i64: 128, 256>}, {pipeline_mode = #tpu.pipeline_mode<synchronous>, transform_indices = @transform_5, window_bounds = array<i64: 1, 256>}, {pipeline_mode = #tpu.pipeline_mode<synchronous>, transform_indices = @transform_6, window_bounds = array<i64: 256, 128>}, {pipeline_mode = #tpu.pipeline_mode<synchronous>, transform_indices = @transform_7, window_bounds = array<i64: 6, 128>}, {transform_indices = @transform_8, window_bounds = array<i64: 16, 128>}]} {
    %c0 = arith.constant 0 : index
    %c0_0 = arith.constant 0 : index
    %0 = vector.load %arg1[%c0, %c0_0] : memref<16x128xf32, #tpu.memory_space<vmem>>, vector<16x128xf32>
    %c0_1 = arith.constant 0 : index
    %c0_2 = arith.constant 0 : index
    %1 = vector.load %arg8[%c0_1, %c0_2] : memref<6x128xf32, #tpu.memory_space<vmem>>, vector<6x128xf32>
    %2 = vector.extract_strided_slice %1 {offsets = [0, 0], sizes = [1, 128], strides = [1, 1]} : vector<6x128xf32> to vector<1x128xf32>
    %3 = vector.extract_strided_slice %1 {offsets = [1, 0], sizes = [1, 128], strides = [1, 1]} : vector<6x128xf32> to vector<1x128xf32>
    %4 = vector.extract_strided_slice %1 {offsets = [2, 0], sizes = [1, 128], strides = [1, 1]} : vector<6x128xf32> to vector<1x128xf32>
    %5 = vector.extract_strided_slice %1 {offsets = [3, 0], sizes = [1, 128], strides = [1, 1]} : vector<6x128xf32> to vector<1x128xf32>
    %6 = vector.extract_strided_slice %1 {offsets = [4, 0], sizes = [1, 128], strides = [1, 1]} : vector<6x128xf32> to vector<1x128xf32>
    %7 = vector.extract_strided_slice %1 {offsets = [5, 0], sizes = [1, 128], strides = [1, 1]} : vector<6x128xf32> to vector<1x128xf32>
    %8 = arith.truncf %0 : vector<16x128xf32> to vector<16x128xbf16>
    %c0_3 = arith.constant 0 : index
    %c0_4 = arith.constant 0 : index
    %9 = vector.load %arg2[%c0_3, %c0_4] : memref<128x384xbf16, #tpu.memory_space<vmem>>, vector<128x384xbf16>
    %cst = arith.constant dense<0.000000e+00> : vector<16x384xf32>
    %10 = tpu.matmul %8, %9, %cst {dimension_numbers = #tpu.dot_dimension_numbers<[1], [0], [0], [1], [0, 0, 1, 1], [], []>} : vector<16x128xbf16>, vector<128x384xbf16>, vector<16x384xf32> -> vector<16x384xf32>
    %c0_5 = arith.constant 0 : index
    %c0_6 = arith.constant 0 : index
    %11 = vector.load %arg3[%c0_5, %c0_6] : memref<1x384xf32, #tpu.memory_space<vmem>>, vector<1x384xf32>
    %12 = vector.broadcast %11 : vector<1x384xf32> to vector<16x384xf32>
    %13 = arith.addf %10, %12 : vector<16x384xf32>
    %14 = vector.extract_strided_slice %13 {offsets = [0, 0], sizes = [16, 128], strides = [1, 1]} : vector<16x384xf32> to vector<16x128xf32>
    %cst_7 = arith.constant 0.176776692 : f32
    %15 = vector.broadcast %cst_7 : f32 to vector<16x128xf32>
    %16 = arith.mulf %14, %15 : vector<16x128xf32>
    %17 = vector.extract_strided_slice %13 {offsets = [0, 128], sizes = [16, 128], strides = [1, 1]} : vector<16x384xf32> to vector<16x128xf32>
    %18 = vector.extract_strided_slice %13 {offsets = [0, 256], sizes = [16, 128], strides = [1, 1]} : vector<16x384xf32> to vector<16x128xf32>
    %19 = vector.extract_strided_slice %16 {offsets = [0, 0], sizes = [16, 32], strides = [1, 1]} : vector<16x128xf32> to vector<16x32xf32>
    %20 = arith.truncf %19 : vector<16x32xf32> to vector<16x32xbf16>
    %21 = vector.extract_strided_slice %17 {offsets = [0, 0], sizes = [16, 32], strides = [1, 1]} : vector<16x128xf32> to vector<16x32xf32>
    %22 = arith.truncf %21 : vector<16x32xf32> to vector<16x32xbf16>
    %23 = vector.extract_strided_slice %18 {offsets = [0, 0], sizes = [16, 32], strides = [1, 1]} : vector<16x128xf32> to vector<16x32xf32>
    %24 = arith.truncf %23 : vector<16x32xf32> to vector<16x32xbf16>
    "tpu.trace_start"() <{level = 10 : i32, message = "qd,kd->qk"}> : () -> ()
    %cst_8 = arith.constant dense<0.000000e+00> : vector<16x16xf32>
    %25 = tpu.matmul %20, %22, %cst_8 {dimension_numbers = #tpu.dot_dimension_numbers<[1], [1], [0], [0], [0, 0, 1, 0], [], []>} : vector<16x32xbf16>, vector<16x32xbf16>, vector<16x16xf32> -> vector<16x16xf32>
    "tpu.trace_stop"() : () -> ()
    %cst_9 = arith.constant dense<0xFF800000> : vector<16xf32>
    %26 = vector.multi_reduction <maximumf>, %25, %cst_9 [1] : vector<16x16xf32> to vector<16xf32>
    %27 = vector.shape_cast %26 : vector<16xf32> to vector<16x1xf32>
    %28 = vector.broadcast %27 : vector<16x1xf32> to vector<16x16xf32>
    %29 = arith.subf %25, %28 : vector<16x16xf32>
    %30 = math.exp %29 : vector<16x16xf32>
    %cst_10 = arith.constant dense<0.000000e+00> : vector<16xf32>
    %31 = vector.multi_reduction <add>, %30, %cst_10 [1] : vector<16x16xf32> to vector<16xf32>
    %32 = vector.shape_cast %31 : vector<16xf32> to vector<16x1xf32>
    %33 = tpu.reciprocal %32 {approx = true} : vector<16x1xf32> -> vector<16x1xf32>
    %34 = vector.broadcast %33 : vector<16x1xf32> to vector<16x16xf32>
    %35 = arith.mulf %30, %34 : vector<16x16xf32>
    %36 = arith.truncf %35 : vector<16x16xf32> to vector<16x16xbf16>
    %cst_11 = arith.constant dense<0.000000e+00> : vector<16x32xf32>
    %37 = tpu.matmul %36, %24, %cst_11 {dimension_numbers = #tpu.dot_dimension_numbers<[1], [0], [0], [1], [0, 0, 1, 1], [], []>} : vector<16x16xbf16>, vector<16x32xbf16>, vector<16x32xf32> -> vector<16x32xf32>
    %c0_12 = arith.constant 0 : index
    %c0_13 = arith.constant 0 : index
    %38 = vector.load %arg10[%c0_12, %c0_13] : memref<16x128xf32, #tpu.memory_space<vmem>>, vector<16x32xf32>
    tpu.vector_store %arg10[%c0_12, %c0_13], %37 {strides = array<i32>} : memref<16x128xf32, #tpu.memory_space<vmem>>, vector<16x32xf32>,
    %39 = vector.extract_strided_slice %16 {offsets = [0, 32], sizes = [16, 32], strides = [1, 1]} : vector<16x128xf32> to vector<16x32xf32>
    %40 = arith.truncf %39 : vector<16x32xf32> to vector<16x32xbf16>
    %41 = vector.extract_strided_slice %17 {offsets = [0, 32], sizes = [16, 32], strides = [1, 1]} : vector<16x128xf32> to vector<16x32xf32>
    %42 = arith.truncf %41 : vector<16x32xf32> to vector<16x32xbf16>
    %43 = vector.extract_strided_slice %18 {offsets = [0, 32], sizes = [16, 32], strides = [1, 1]} : vector<16x128xf32> to vector<16x32xf32>
    %44 = arith.truncf %43 : vector<16x32xf32> to vector<16x32xbf16>
    "tpu.trace_start"() <{level = 10 : i32, message = "qd,kd->qk"}> : () -> ()
    %cst_14 = arith.constant dense<0.000000e+00> : vector<16x16xf32>
    %45 = tpu.matmul %40, %42, %cst_14 {dimension_numbers = #tpu.dot_dimension_numbers<[1], [1], [0], [0], [0, 0, 1, 0], [], []>} : vector<16x32xbf16>, vector<16x32xbf16>, vector<16x16xf32> -> vector<16x16xf32>
    "tpu.trace_stop"() : () -> ()
    %cst_15 = arith.constant dense<0xFF800000> : vector<16xf32>
    %46 = vector.multi_reduction <maximumf>, %45, %cst_15 [1] : vector<16x16xf32> to vector<16xf32>
    %47 = vector.shape_cast %46 : vector<16xf32> to vector<16x1xf32>
    %48 = vector.broadcast %47 : vector<16x1xf32> to vector<16x16xf32>
    %49 = arith.subf %45, %48 : vector<16x16xf32>
    %50 = math.exp %49 : vector<16x16xf32>
    %cst_16 = arith.constant dense<0.000000e+00> : vector<16xf32>
    %51 = vector.multi_reduction <add>, %50, %cst_16 [1] : vector<16x16xf32> to vector<16xf32>
    %52 = vector.shape_cast %51 : vector<16xf32> to vector<16x1xf32>
    %53 = tpu.reciprocal %52 {approx = true} : vector<16x1xf32> -> vector<16x1xf32>
    %54 = vector.broadcast %53 : vector<16x1xf32> to vector<16x16xf32>
    %55 = arith.mulf %50, %54 : vector<16x16xf32>
    %56 = arith.truncf %55 : vector<16x16xf32> to vector<16x16xbf16>
    %cst_17 = arith.constant dense<0.000000e+00> : vector<16x32xf32>
    %57 = tpu.matmul %56, %44, %cst_17 {dimension_numbers = #tpu.dot_dimension_numbers<[1], [0], [0], [1], [0, 0, 1, 1], [], []>} : vector<16x16xbf16>, vector<16x32xbf16>, vector<16x32xf32> -> vector<16x32xf32>
    %c0_18 = arith.constant 0 : index
    %c32 = arith.constant 32 : index
    %58 = vector.load %arg10[%c0_18, %c32] : memref<16x128xf32, #tpu.memory_space<vmem>>, vector<16x32xf32>
    tpu.vector_store %arg10[%c0_18, %c32], %57 {strides = array<i32>} : memref<16x128xf32, #tpu.memory_space<vmem>>, vector<16x32xf32>,
    %59 = vector.extract_strided_slice %16 {offsets = [0, 64], sizes = [16, 32], strides = [1, 1]} : vector<16x128xf32> to vector<16x32xf32>
    %60 = arith.truncf %59 : vector<16x32xf32> to vector<16x32xbf16>
    %61 = vector.extract_strided_slice %17 {offsets = [0, 64], sizes = [16, 32], strides = [1, 1]} : vector<16x128xf32> to vector<16x32xf32>
    %62 = arith.truncf %61 : vector<16x32xf32> to vector<16x32xbf16>
    %63 = vector.extract_strided_slice %18 {offsets = [0, 64], sizes = [16, 32], strides = [1, 1]} : vector<16x128xf32> to vector<16x32xf32>
    %64 = arith.truncf %63 : vector<16x32xf32> to vector<16x32xbf16>
    "tpu.trace_start"() <{level = 10 : i32, message = "qd,kd->qk"}> : () -> ()
    %cst_19 = arith.constant dense<0.000000e+00> : vector<16x16xf32>
    %65 = tpu.matmul %60, %62, %cst_19 {dimension_numbers = #tpu.dot_dimension_numbers<[1], [1], [0], [0], [0, 0, 1, 0], [], []>} : vector<16x32xbf16>, vector<16x32xbf16>, vector<16x16xf32> -> vector<16x16xf32>
    "tpu.trace_stop"() : () -> ()
    %cst_20 = arith.constant dense<0xFF800000> : vector<16xf32>
    %66 = vector.multi_reduction <maximumf>, %65, %cst_20 [1] : vector<16x16xf32> to vector<16xf32>
    %67 = vector.shape_cast %66 : vector<16xf32> to vector<16x1xf32>
    %68 = vector.broadcast %67 : vector<16x1xf32> to vector<16x16xf32>
    %69 = arith.subf %65, %68 : vector<16x16xf32>
    %70 = math.exp %69 : vector<16x16xf32>
    %cst_21 = arith.constant dense<0.000000e+00> : vector<16xf32>
    %71 = vector.multi_reduction <add>, %70, %cst_21 [1] : vector<16x16xf32> to vector<16xf32>
    %72 = vector.shape_cast %71 : vector<16xf32> to vector<16x1xf32>
    %73 = tpu.reciprocal %72 {approx = true} : vector<16x1xf32> -> vector<16x1xf32>
    %74 = vector.broadcast %73 : vector<16x1xf32> to vector<16x16xf32>
    %75 = arith.mulf %70, %74 : vector<16x16xf32>
    %76 = arith.truncf %75 : vector<16x16xf32> to vector<16x16xbf16>
    %cst_22 = arith.constant dense<0.000000e+00> : vector<16x32xf32>
    %77 = tpu.matmul %76, %64, %cst_22 {dimension_numbers = #tpu.dot_dimension_numbers<[1], [0], [0], [1], [0, 0, 1, 1], [], []>} : vector<16x16xbf16>, vector<16x32xbf16>, vector<16x32xf32> -> vector<16x32xf32>
    %c0_23 = arith.constant 0 : index
    %c64 = arith.constant 64 : index
    %78 = vector.load %arg10[%c0_23, %c64] : memref<16x128xf32, #tpu.memory_space<vmem>>, vector<16x32xf32>
    tpu.vector_store %arg10[%c0_23, %c64], %77 {strides = array<i32>} : memref<16x128xf32, #tpu.memory_space<vmem>>, vector<16x32xf32>,
    %79 = vector.extract_strided_slice %16 {offsets = [0, 96], sizes = [16, 32], strides = [1, 1]} : vector<16x128xf32> to vector<16x32xf32>
    %80 = arith.truncf %79 : vector<16x32xf32> to vector<16x32xbf16>
    %81 = vector.extract_strided_slice %17 {offsets = [0, 96], sizes = [16, 32], strides = [1, 1]} : vector<16x128xf32> to vector<16x32xf32>
    %82 = arith.truncf %81 : vector<16x32xf32> to vector<16x32xbf16>
    %83 = vector.extract_strided_slice %18 {offsets = [0, 96], sizes = [16, 32], strides = [1, 1]} : vector<16x128xf32> to vector<16x32xf32>
    %84 = arith.truncf %83 : vector<16x32xf32> to vector<16x32xbf16>
    "tpu.trace_start"() <{level = 10 : i32, message = "qd,kd->qk"}> : () -> ()
    %cst_24 = arith.constant dense<0.000000e+00> : vector<16x16xf32>
    %85 = tpu.matmul %80, %82, %cst_24 {dimension_numbers = #tpu.dot_dimension_numbers<[1], [1], [0], [0], [0, 0, 1, 0], [], []>} : vector<16x32xbf16>, vector<16x32xbf16>, vector<16x16xf32> -> vector<16x16xf32>
    "tpu.trace_stop"() : () -> ()
    %cst_25 = arith.constant dense<0xFF800000> : vector<16xf32>
    %86 = vector.multi_reduction <maximumf>, %85, %cst_25 [1] : vector<16x16xf32> to vector<16xf32>
    %87 = vector.shape_cast %86 : vector<16xf32> to vector<16x1xf32>
    %88 = vector.broadcast %87 : vector<16x1xf32> to vector<16x16xf32>
    %89 = arith.subf %85, %88 : vector<16x16xf32>
    %90 = math.exp %89 : vector<16x16xf32>
    %cst_26 = arith.constant dense<0.000000e+00> : vector<16xf32>
    %91 = vector.multi_reduction <add>, %90, %cst_26 [1] : vector<16x16xf32> to vector<16xf32>
    %92 = vector.shape_cast %91 : vector<16xf32> to vector<16x1xf32>
    %93 = tpu.reciprocal %92 {approx = true} : vector<16x1xf32> -> vector<16x1xf32>
    %94 = vector.broadcast %93 : vector<16x1xf32> to vector<16x16xf32>
    %95 = arith.mulf %90, %94 : vector<16x16xf32>
    %96 = arith.truncf %95 : vector<16x16xf32> to vector<16x16xbf16>
    %cst_27 = arith.constant dense<0.000000e+00> : vector<16x32xf32>
    %97 = tpu.matmul %96, %84, %cst_27 {dimension_numbers = #tpu.dot_dimension_numbers<[1], [0], [0], [1], [0, 0, 1, 1], [], []>} : vector<16x16xbf16>, vector<16x32xbf16>, vector<16x32xf32> -> vector<16x32xf32>
    %c0_28 = arith.constant 0 : index
    %c96 = arith.constant 96 : index
    %98 = vector.load %arg10[%c0_28, %c96] : memref<16x128xf32, #tpu.memory_space<vmem>>, vector<16x32xf32>
    tpu.vector_store %arg10[%c0_28, %c96], %97 {strides = array<i32>} : memref<16x128xf32, #tpu.memory_space<vmem>>, vector<16x32xf32>,
    %c0_29 = arith.constant 0 : index
    %c0_30 = arith.constant 0 : index
    %99 = vector.load %arg10[%c0_29, %c0_30] : memref<16x128xf32, #tpu.memory_space<vmem>>, vector<16x128xf32>
    %100 = arith.truncf %99 : vector<16x128xf32> to vector<16x128xbf16>
    %c0_31 = arith.constant 0 : index
    %c0_32 = arith.constant 0 : index
    %101 = vector.load %arg4[%c0_31, %c0_32] : memref<128x128xbf16, #tpu.memory_space<vmem>>, vector<128x128xbf16>
    %cst_33 = arith.constant dense<0.000000e+00> : vector<16x128xf32>
    %102 = tpu.matmul %100, %101, %cst_33 {dimension_numbers = #tpu.dot_dimension_numbers<[1], [0], [0], [1], [0, 0, 1, 1], [], []>} : vector<16x128xbf16>, vector<128x128xbf16>, vector<16x128xf32> -> vector<16x128xf32>
    %103 = vector.broadcast %2 : vector<1x128xf32> to vector<16x128xf32>
    %104 = arith.addf %102, %103 : vector<16x128xf32>
    %105 = arith.addf %0, %104 : vector<16x128xf32>
    %cst_34 = arith.constant dense<0.000000e+00> : vector<16xf32>
    %106 = vector.multi_reduction <add>, %105, %cst_34 [1] : vector<16x128xf32> to vector<16xf32>
    %107 = vector.shape_cast %106 : vector<16xf32> to vector<16x1xf32>
    %cst_35 = arith.constant 1.280000e+02 : f32
    %108 = vector.broadcast %cst_35 : f32 to vector<16x1xf32>
    %109 = arith.divf %107, %108 : vector<16x1xf32>
    %110 = vector.broadcast %109 : vector<16x1xf32> to vector<16x128xf32>
    %111 = arith.subf %105, %110 : vector<16x128xf32>
    %112 = arith.mulf %111, %111 : vector<16x128xf32>
    %cst_36 = arith.constant dense<0.000000e+00> : vector<16xf32>
    %113 = vector.multi_reduction <add>, %112, %cst_36 [1] : vector<16x128xf32> to vector<16xf32>
    %114 = vector.shape_cast %113 : vector<16xf32> to vector<16x1xf32>
    %cst_37 = arith.constant 1.280000e+02 : f32
    %115 = vector.broadcast %cst_37 : f32 to vector<16x1xf32>
    %116 = arith.divf %114, %115 : vector<16x1xf32>
    %117 = vector.broadcast %109 : vector<16x1xf32> to vector<16x128xf32>
    %118 = arith.subf %105, %117 : vector<16x128xf32>
    %cst_38 = arith.constant 9.99999974E-6 : f32
    %119 = vector.broadcast %cst_38 : f32 to vector<16x1xf32>
    %120 = arith.addf %116, %119 : vector<16x1xf32>
    %121 = math.rsqrt %120 : vector<16x1xf32>
    %122 = vector.broadcast %121 : vector<16x1xf32> to vector<16x128xf32>
    %123 = arith.mulf %118, %122 : vector<16x128xf32>
    %124 = vector.broadcast %3 : vector<1x128xf32> to vector<16x128xf32>
    %125 = arith.mulf %123, %124 : vector<16x128xf32>
    %126 = vector.broadcast %4 : vector<1x128xf32> to vector<16x128xf32>
    %127 = arith.addf %125, %126 : vector<16x128xf32>
    %128 = arith.truncf %127 : vector<16x128xf32> to vector<16x128xbf16>
    %c0_39 = arith.constant 0 : index
    %c0_40 = arith.constant 0 : index
    %129 = vector.load %arg5[%c0_39, %c0_40] : memref<128x256xbf16, #tpu.memory_space<vmem>>, vector<128x256xbf16>
    %cst_41 = arith.constant dense<0.000000e+00> : vector<16x256xf32>
    %130 = tpu.matmul %128, %129, %cst_41 {dimension_numbers = #tpu.dot_dimension_numbers<[1], [0], [0], [1], [0, 0, 1, 1], [], []>} : vector<16x128xbf16>, vector<128x256xbf16>, vector<16x256xf32> -> vector<16x256xf32>
    %c0_42 = arith.constant 0 : index
    %c0_43 = arith.constant 0 : index
    %131 = vector.load %arg6[%c0_42, %c0_43] : memref<1x256xf32, #tpu.memory_space<vmem>>, vector<1x256xf32>
    %132 = vector.broadcast %131 : vector<1x256xf32> to vector<16x256xf32>
    %133 = arith.addf %130, %132 : vector<16x256xf32>
    %cst_44 = arith.constant 0.000000e+00 : f32
    %134 = vector.broadcast %cst_44 : f32 to vector<16x256xf32>
    %135 = arith.maximumf %133, %134 : vector<16x256xf32>
    %136 = arith.truncf %135 : vector<16x256xf32> to vector<16x256xbf16>
    %c0_45 = arith.constant 0 : index
    %c0_46 = arith.constant 0 : index
    %137 = vector.load %arg7[%c0_45, %c0_46] : memref<256x128xbf16, #tpu.memory_space<vmem>>, vector<256x128xbf16>
    %cst_47 = arith.constant dense<0.000000e+00> : vector<16x128xf32>
    %138 = tpu.matmul %136, %137, %cst_47 {dimension_numbers = #tpu.dot_dimension_numbers<[1], [0], [0], [1], [0, 0, 1, 1], [], []>} : vector<16x256xbf16>, vector<256x128xbf16>, vector<16x128xf32> -> vector<16x128xf32>
    %139 = vector.broadcast %5 : vector<1x128xf32> to vector<16x128xf32>
    %140 = arith.addf %138, %139 : vector<16x128xf32>
    %141 = arith.addf %127, %140 : vector<16x128xf32>
    %cst_48 = arith.constant dense<0.000000e+00> : vector<16xf32>
    %142 = vector.multi_reduction <add>, %141, %cst_48 [1] : vector<16x128xf32> to vector<16xf32>
    %143 = vector.shape_cast %142 : vector<16xf32> to vector<16x1xf32>
    %cst_49 = arith.constant 1.280000e+02 : f32
    %144 = vector.broadcast %cst_49 : f32 to vector<16x1xf32>
    %145 = arith.divf %143, %144 : vector<16x1xf32>
    %146 = vector.broadcast %145 : vector<16x1xf32> to vector<16x128xf32>
    %147 = arith.subf %141, %146 : vector<16x128xf32>
    %148 = arith.mulf %147, %147 : vector<16x128xf32>
    %cst_50 = arith.constant dense<0.000000e+00> : vector<16xf32>
    %149 = vector.multi_reduction <add>, %148, %cst_50 [1] : vector<16x128xf32> to vector<16xf32>
    %150 = vector.shape_cast %149 : vector<16xf32> to vector<16x1xf32>
    %cst_51 = arith.constant 1.280000e+02 : f32
    %151 = vector.broadcast %cst_51 : f32 to vector<16x1xf32>
    %152 = arith.divf %150, %151 : vector<16x1xf32>
    %153 = vector.broadcast %145 : vector<16x1xf32> to vector<16x128xf32>
    %154 = arith.subf %141, %153 : vector<16x128xf32>
    %cst_52 = arith.constant 9.99999974E-6 : f32
    %155 = vector.broadcast %cst_52 : f32 to vector<16x1xf32>
    %156 = arith.addf %152, %155 : vector<16x1xf32>
    %157 = math.rsqrt %156 : vector<16x1xf32>
    %158 = vector.broadcast %157 : vector<16x1xf32> to vector<16x128xf32>
    %159 = arith.mulf %154, %158 : vector<16x128xf32>
    %160 = vector.broadcast %6 : vector<1x128xf32> to vector<16x128xf32>
    %161 = arith.mulf %159, %160 : vector<16x128xf32>
    %162 = vector.broadcast %7 : vector<1x128xf32> to vector<16x128xf32>
    %163 = arith.addf %161, %162 : vector<16x128xf32>
    %c0_53 = arith.constant 0 : index
    %c0_54 = arith.constant 0 : index
    %164 = vector.load %arg9[%c0_53, %c0_54] : memref<16x128xf32, #tpu.memory_space<vmem>>, vector<16x128xf32>
    tpu.vector_store %arg9[%c0_53, %c0_54], %163 {strides = array<i32>} : memref<16x128xf32, #tpu.memory_space<vmem>>, vector<16x128xf32>,
    return
  }
  func.func @transform_0(%arg0: i32) -> (i32, i32) {
    %c0_i32 = arith.constant 0 : i32
    %c0_i32_0 = arith.constant 0 : i32
    return %c0_i32, %arg0 : i32, i32
  }
  func.func @transform_1(%arg0: i32) -> (i32, i32) {
    %c0_i32 = arith.constant 0 : i32
    %c0_i32_0 = arith.constant 0 : i32
    %c0_i32_1 = arith.constant 0 : i32
    return %c0_i32, %c0_i32_0 : i32, i32
  }
  func.func @transform_2(%arg0: i32) -> (i32, i32) {
    %c0_i32 = arith.constant 0 : i32
    %c0_i32_0 = arith.constant 0 : i32
    %c0_i32_1 = arith.constant 0 : i32
    return %c0_i32, %c0_i32_0 : i32, i32
  }
  func.func @transform_3(%arg0: i32) -> (i32, i32) {
    %c0_i32 = arith.constant 0 : i32
    %c0_i32_0 = arith.constant 0 : i32
    %c0_i32_1 = arith.constant 0 : i32
    return %c0_i32, %c0_i32_0 : i32, i32
  }
  func.func @transform_4(%arg0: i32) -> (i32, i32) {
    %c0_i32 = arith.constant 0 : i32
    %c0_i32_0 = arith.constant 0 : i32
    %c0_i32_1 = arith.constant 0 : i32
    return %c0_i32, %c0_i32_0 : i32, i32
  }
  func.func @transform_5(%arg0: i32) -> (i32, i32) {
    %c0_i32 = arith.constant 0 : i32
    %c0_i32_0 = arith.constant 0 : i32
    %c0_i32_1 = arith.constant 0 : i32
    return %c0_i32, %c0_i32_0 : i32, i32
  }
  func.func @transform_6(%arg0: i32) -> (i32, i32) {
    %c0_i32 = arith.constant 0 : i32
    %c0_i32_0 = arith.constant 0 : i32
    %c0_i32_1 = arith.constant 0 : i32
    return %c0_i32, %c0_i32_0 : i32, i32
  }
  func.func @transform_7(%arg0: i32) -> (i32, i32) {
    %c0_i32 = arith.constant 0 : i32
    %c0_i32_0 = arith.constant 0 : i32
    %c0_i32_1 = arith.constant 0 : i32
    return %c0_i32, %c0_i32_0 : i32, i32
  }
  func.func @transform_8(%arg0: i32) -> (i32, i32) {
    %c0_i32 = arith.constant 0 : i32
    %c0_i32_0 = arith.constant 0 : i32
    return %c0_i32, %arg0 : i32, i32
  }
}

</mosaic_0001>

<llo_original>
// kernel: transformer_block.1
$region0: #{transformer_block.1}
  #allocation0 [shape = 'u32[]', space=smem, size = 0x4, offset = 0x4, fixed_abs, tag = 'smem constant byte address 0x4 - core index']
  #allocation1 [shape = 'u32[144,128]{1,0:T(1,128)}', space=vmem, size = 0x12000, scoped, tag = 'internal scratch']
  #allocation2 [shape = 'f32[16,128]{1,0:T(8,128)}', space=vmem, size = 0x2000, scoped, tag = 'scratch operand']
  %s0 = inlined_call_operand.vmem [shape: f32[16,256], index: 0, kind: input, shape index: {}]
  %s1 = inlined_call_operand.hbm [shape: bf16[128,384], index: 1, kind: input, shape index: {}]
  %s2 = inlined_call_operand.vmem [shape: f32[1,384], index: 2, kind: input, shape index: {}]
  %s3 = inlined_call_operand.vmem [shape: bf16[128,128], index: 3, kind: input, shape index: {}]
  %s4 = inlined_call_operand.hbm [shape: bf16[128,256], index: 4, kind: input, shape index: {}]
  %s5 = inlined_call_operand.vmem [shape: f32[1,256], index: 5, kind: input, shape index: {}]
  %s6 = inlined_call_operand.hbm [shape: bf16[256,128], index: 6, kind: input, shape index: {}]
  %s7 = inlined_call_operand.vmem [shape: f32[6,128], index: 7, kind: input, shape index: {}]
  %s8 = inlined_call_operand.vmem [shape: f32[16,256], index: 8, kind: output, shape index: {}]
  %s9 = sld [smem:[#allocation0]]
  $region149: #{transformer_block.1} parent=0
    _
  %s11 = ssub.s32 1, %s9
  %s12 = scalar_select 0, %s11, %s9
  $region1: #{transformer_block.1} parent=0
    #allocation3 [shape = 'u8[16384]{0}', space=vmem, size = 0x4000, scoped, tag = 'input window, operand 0']
    #allocation4 [shape = 'u8[98304]{0}', space=vmem, size = 0x18000, scoped, tag = 'input window, operand 1, single buffered']
    #allocation5 [shape = 's32[2]{0}', space=sflag, size = 0x8, scoped, tag = 'scoped memory for transformer_block.1']
    #allocation6 [shape = 'u8[65536]{0}', space=vmem, size = 0x10000, scoped, tag = 'input window, operand 4, single buffered']
    #allocation7 [shape = 's32[1]{0}', space=sflag, size = 0x4, scoped, tag = 'scoped memory for transformer_block.1']
    #allocation8 [shape = 'u8[65536]{0}', space=vmem, size = 0x10000, scoped, tag = 'input window, operand 6, single buffered']
    #allocation9 [shape = 'u8[16384]{0}', space=vmem, size = 0x4000, scoped, tag = 'output window, operand 0']
    %13 = vsyncpa [#allocation5], 0
    %14 = vsyncpa [#allocation7], 0
    loop: start=0, step=1, limit=4
    $region2: #{transformer_block.1} parent=1 // loop_pre_header
      _
    $region3: #{transformer_block.1} parent=1 // loop_header
      %s16 = sphi 0, %s20
      %p17 = scmp.ge.s32.totalorder %s16, 4
      %s26 = sphi 0, %s28
      %s29 = sphi 0, %s26
      %s30 = sphi 0, %s29
      %s46 = sphi 0, %s30
      %s50 = sphi 0, %s50
      %s52 = sphi 0, %s50
      %s53 = sphi 0, %s52
      %s67 = sphi 0, %s53
      %s71 = sphi 0, %s71
      %s73 = sphi 0, %s71
      %s74 = sphi 0, %s73
      %s88 = sphi 0, %s74
      %s92 = sphi 0, %s92
      %s94 = sphi 0, %s92
      %s95 = sphi 0, %s94
      %s109 = sphi 0, %s95
      %s113 = sphi 0, %s113
      %s115 = sphi 0, %s113
      %s116 = sphi 0, %s115
      %s130 = sphi 0, %s116
      %s134 = sphi 0, %s134
      %s136 = sphi 0, %s134
      %s137 = sphi 0, %s136
      %s151 = sphi 0, %s137
      %s155 = sphi 0, %s155
      %s157 = sphi 0, %s155
      %s158 = sphi 0, %s157
      %s172 = sphi 0, %s158
      %s176 = sphi 0, %s176
      %s178 = sphi 0, %s176
      %s179 = sphi 0, %s178
      %s193 = sphi 0, %s179
      %s199 = sphi 0, %s201
      %s202 = sphi 0, %s199
      %s203 = sphi 0, %s202
      %s219 = sphi 0, %s203
    $region4: #{transformer_block.1} parent=1 // loop_header_branch
      %19 = sbr.rel (%p17) target = $region8
    $region5: #{transformer_block.1} parent=1 // loop_body
      %s21 = ssub.s32 %s16, 1
      %s22 = ssub.s32 %s16, 2
      %s23 = sadd.s32 %s16, 1
      %s24 = ssub.s32 %s16, %s23
      %p25 = scmp.eq.s32.totalorder %s24, 0
      %s27 = sadd.s32 %s26, 1
      %s28 = scalar_select %p25, %s26, %s27
      %p31 = pneg %p25
      %p32 = scmp.eq.s32.totalorder %s16, 1
      %p33 = por %p31, %p32
      %p34 = scmp.ne.s32.totalorder %s26, %s29
      %p35 = scmp.eq.s32.totalorder %s16, 0
      %p36 = por %p34, %p35
      %p37 = scmp.ne.s32.totalorder %s26, %s29
      %p38 = scmp.eq.s32.totalorder %s21, 1
      %p39 = por %p37, %p38
      %p40 = scmp.ne.s32.totalorder %s29, %s30
      %p41 = scmp.eq.s32.totalorder %s21, 0
      %p42 = por %p40, %p41
      %p43 = scmp.ne.s32.totalorder %s29, %s30
      %p44 = scmp.eq.s32.totalorder %s22, 1
      %p45 = por %p43, %p44
      %p47 = scmp.ne.s32.totalorder %s30, %s46
      %p48 = scmp.eq.s32.totalorder %s22, 0
      %p49 = por %p47, %p48
      %s51 = sadd.s32 %s50, 1
      %p54 = scmp.eq.s32.totalorder %s16, 1
      %p55 = scmp.ne.s32.totalorder %s50, %s52
      %p56 = scmp.eq.s32.totalorder %s16, 0
      %p57 = por %p55, %p56
      %p58 = scmp.ne.s32.totalorder %s50, %s52
      %p59 = scmp.eq.s32.totalorder %s21, 1
      %p60 = por %p58, %p59
      %p61 = scmp.ne.s32.totalorder %s52, %s53
      %p62 = scmp.eq.s32.totalorder %s21, 0
      %p63 = por %p61, %p62
      %p64 = scmp.ne.s32.totalorder %s52, %s53
      %p65 = scmp.eq.s32.totalorder %s22, 1
      %p66 = por %p64, %p65
      %p68 = scmp.ne.s32.totalorder %s53, %s67
      %p69 = scmp.eq.s32.totalorder %s22, 0
      %p70 = por %p68, %p69
      %s72 = sadd.s32 %s71, 1
      %p75 = scmp.eq.s32.totalorder %s16, 1
      %p76 = scmp.ne.s32.totalorder %s71, %s73
      %p77 = scmp.eq.s32.totalorder %s16, 0
      %p78 = por %p76, %p77
      %p79 = scmp.ne.s32.totalorder %s71, %s73
      %p80 = scmp.eq.s32.totalorder %s21, 1
      %p81 = por %p79, %p80
      %p82 = scmp.ne.s32.totalorder %s73, %s74
      %p83 = scmp.eq.s32.totalorder %s21, 0
      %p84 = por %p82, %p83
      %p85 = scmp.ne.s32.totalorder %s73, %s74
      %p86 = scmp.eq.s32.totalorder %s22, 1
      %p87 = por %p85, %p86
      %p89 = scmp.ne.s32.totalorder %s74, %s88
      %p90 = scmp.eq.s32.totalorder %s22, 0
      %p91 = por %p89, %p90
      %s93 = sadd.s32 %s92, 1
      %p96 = scmp.eq.s32.totalorder %s16, 1
      %p97 = scmp.ne.s32.totalorder %s92, %s94
      %p98 = scmp.eq.s32.totalorder %s16, 0
      %p99 = por %p97, %p98
      %p100 = scmp.ne.s32.totalorder %s92, %s94
      %p101 = scmp.eq.s32.totalorder %s21, 1
      %p102 = por %p100, %p101
      %p103 = scmp.ne.s32.totalorder %s94, %s95
      %p104 = scmp.eq.s32.totalorder %s21, 0
      %p105 = por %p103, %p104
      %p106 = scmp.ne.s32.totalorder %s94, %s95
      %p107 = scmp.eq.s32.totalorder %s22, 1
      %p108 = por %p106, %p107
      %p110 = scmp.ne.s32.totalorder %s95, %s109
      %p111 = scmp.eq.s32.totalorder %s22, 0
      %p112 = por %p110, %p111
      %s114 = sadd.s32 %s113, 1
      %p117 = scmp.eq.s32.totalorder %s16, 1
      %p118 = scmp.ne.s32.totalorder %s113, %s115
      %p119 = scmp.eq.s32.totalorder %s16, 0
      %p120 = por %p118, %p119
      %p121 = scmp.ne.s32.totalorder %s113, %s115
      %p122 = scmp.eq.s32.totalorder %s21, 1
      %p123 = por %p121, %p122
      %p124 = scmp.ne.s32.totalorder %s115, %s116
      %p125 = scmp.eq.s32.totalorder %s21, 0
      %p126 = por %p124, %p125
      %p127 = scmp.ne.s32.totalorder %s115, %s116
      %p128 = scmp.eq.s32.totalorder %s22, 1
      %p129 = por %p127, %p128
      %p131 = scmp.ne.s32.totalorder %s116, %s130
      %p132 = scmp.eq.s32.totalorder %s22, 0
      %p133 = por %p131, %p132
      %s135 = sadd.s32 %s134, 1
      %p138 = scmp.eq.s32.totalorder %s16, 1
      %p139 = scmp.ne.s32.totalorder %s134, %s136
      %p140 = scmp.eq.s32.totalorder %s16, 0
      %p141 = por %p139, %p140
      %p142 = scmp.ne.s32.totalorder %s134, %s136
      %p143 = scmp.eq.s32.totalorder %s21, 1
      %p144 = por %p142, %p143
      %p145 = scmp.ne.s32.totalorder %s136, %s137
      %p146 = scmp.eq.s32.totalorder %s21, 0
      %p147 = por %p145, %p146
      %p148 = scmp.ne.s32.totalorder %s136, %s137
      %p149 = scmp.eq.s32.totalorder %s22, 1
      %p150 = por %p148, %p149
      %p152 = scmp.ne.s32.totalorder %s137, %s151
      %p153 = scmp.eq.s32.totalorder %s22, 0
      %p154 = por %p152, %p153
      %s156 = sadd.s32 %s155, 1
      %p159 = scmp.eq.s32.totalorder %s16, 1
      %p160 = scmp.ne.s32.totalorder %s155, %s157
      %p161 = scmp.eq.s32.totalorder %s16, 0
      %p162 = por %p160, %p161
      %p163 = scmp.ne.s32.totalorder %s155, %s157
      %p164 = scmp.eq.s32.totalorder %s21, 1
      %p165 = por %p163, %p164
      %p166 = scmp.ne.s32.totalorder %s157, %s158
      %p167 = scmp.eq.s32.totalorder %s21, 0
      %p168 = por %p166, %p167
      %p169 = scmp.ne.s32.totalorder %s157, %s158
      %p170 = scmp.eq.s32.totalorder %s22, 1
      %p171 = por %p169, %p170
      %p173 = scmp.ne.s32.totalorder %s158, %s172
      %p174 = scmp.eq.s32.totalorder %s22, 0
      %p175 = por %p173, %p174
      %s177 = sadd.s32 %s176, 1
      %p180 = scmp.eq.s32.totalorder %s16, 1
      %p181 = scmp.ne.s32.totalorder %s176, %s178
      %p182 = scmp.eq.s32.totalorder %s16, 0
      %p183 = por %p181, %p182
      %p184 = scmp.ne.s32.totalorder %s176, %s178
      %p185 = scmp.eq.s32.totalorder %s21, 1
      %p186 = por %p184, %p185
      %p187 = scmp.ne.s32.totalorder %s178, %s179
      %p188 = scmp.eq.s32.totalorder %s21, 0
      %p189 = por %p187, %p188
      %p190 = scmp.ne.s32.totalorder %s178, %s179
      %p191 = scmp.eq.s32.totalorder %s22, 1
      %p192 = por %p190, %p191
      %p194 = scmp.ne.s32.totalorder %s179, %s193
      %p195 = scmp.eq.s32.totalorder %s22, 0
      %p196 = por %p194, %p195
      %s197 = ssub.s32 %s16, %s23
      %p198 = scmp.eq.s32.totalorder %s197, 0
      %s200 = sadd.s32 %s199, 1
      %s201 = scalar_select %p198, %s199, %s200
      %p204 = pneg %p198
      %p205 = scmp.eq.s32.totalorder %s16, 1
      %p206 = por %p204, %p205
      %p207 = scmp.ne.s32.totalorder %s199, %s202
      %p208 = scmp.eq.s32.totalorder %s16, 0
      %p209 = por %p207, %p208
      %p210 = scmp.ne.s32.totalorder %s199, %s202
      %p211 = scmp.eq.s32.totalorder %s21, 1
      %p212 = por %p210, %p211
      %p213 = scmp.ne.s32.totalorder %s202, %s203
      %p214 = scmp.eq.s32.totalorder %s21, 0
      %p215 = por %p213, %p214
      %p216 = scmp.ne.s32.totalorder %s202, %s203
      %p217 = scmp.eq.s32.totalorder %s22, 1
      %p218 = por %p216, %p217
      %p220 = scmp.ne.s32.totalorder %s203, %s219
      %p221 = scmp.eq.s32.totalorder %s22, 0
      %p222 = por %p220, %p221
      %p223 = scmp.le.s32.totalorder 1, %s16
      %p224 = scmp.lt.s32.totalorder %s16, 3
      %p225 = pnand %p223, %p224
      %p226 = pneg %p225
      // Predicated region
      $region9: #{transformer_block.1} parent=5 // pred_check
        _
      $region10: #{transformer_block.1} parent=5 // pred_check_branch
        %228 = sbr.rel (%p225) target = $region12
      $region11: #{transformer_block.1} parent=5 // pred_region
        %s229 = ssub.s32 %s16, 1
        // Predicated region
        $region13: #{transformer_block.1} parent=11 // pred_check
          %p230 = pneg %p63
        $region14: #{transformer_block.1} parent=11 // pred_check_branch
          %232 = sbr.rel (%p230) target = $region16
        $region15: #{transformer_block.1} parent=11 // pred_region
          %s234 = ssub.s32 3072, 3072
          %235 = vsyncadd [#allocation5], %s234
          %s236 = sshll.u32 [#allocation4], 4
          %s237 = int_to_ptr.vmem [resolvable:$true] %s236
          %242 = dma.hbm_to_vmem [thread:$0]  %s1, 3072, %s237, [#allocation5], 192, 192, 12
        $region16: #{transformer_block.1} parent=11 // pred_fallthru
          _
        // Predicated region
        $region17: #{transformer_block.1} parent=11 // pred_check
          %p243 = pneg %p84
        $region18: #{transformer_block.1} parent=11 // pred_check_branch
          %245 = sbr.rel (%p243) target = $region20
        $region19: #{transformer_block.1} parent=11 // pred_region
          _
        $region20: #{transformer_block.1} parent=11 // pred_fallthru
          _
        // Predicated region
        $region21: #{transformer_block.1} parent=11 // pred_check
          %p246 = pneg %p105
        $region22: #{transformer_block.1} parent=11 // pred_check_branch
          %248 = sbr.rel (%p246) target = $region24
        $region23: #{transformer_block.1} parent=11 // pred_region
          _
        $region24: #{transformer_block.1} parent=11 // pred_fallthru
          _
        // Predicated region
        $region25: #{transformer_block.1} parent=11 // pred_check
          %p249 = pneg %p126
        $region26: #{transformer_block.1} parent=11 // pred_check_branch
          %251 = sbr.rel (%p249) target = $region28
        $region27: #{transformer_block.1} parent=11 // pred_region
          %s253 = ssub.s32 2048, 2048
          %254 = vsyncadd [#allocation7], %s253
          %s255 = sshll.u32 [#allocation6], 4
          %s256 = int_to_ptr.vmem [resolvable:$true] %s255
          %261 = dma.hbm_to_vmem [thread:$0]  %s4, 2048, %s256, [#allocation7], 128, 128, 8
        $region28: #{transformer_block.1} parent=11 // pred_fallthru
          _
        // Predicated region
        $region29: #{transformer_block.1} parent=11 // pred_check
          %p262 = pneg %p147
        $region30: #{transformer_block.1} parent=11 // pred_check_branch
          %264 = sbr.rel (%p262) target = $region32
        $region31: #{transformer_block.1} parent=11 // pred_region
          _
        $region32: #{transformer_block.1} parent=11 // pred_fallthru
          _
        // Predicated region
        $region33: #{transformer_block.1} parent=11 // pred_check
          %p265 = pneg %p168
        $region34: #{transformer_block.1} parent=11 // pred_check_branch
          %267 = sbr.rel (%p265) target = $region36
        $region35: #{transformer_block.1} parent=11 // pred_region
          %s269 = ssub.s32 2048, 2048
          %270 = vsyncadd [#allocation7], %s269
          %s271 = sshll.u32 [#allocation8], 4
          %s272 = int_to_ptr.vmem [resolvable:$true] %s271
          %277 = dma.hbm_to_vmem [thread:$0]  %s6, 2048, %s272, [#allocation7], 64, 64, 4
        $region36: #{transformer_block.1} parent=11 // pred_fallthru
          _
        // Predicated region
        $region37: #{transformer_block.1} parent=11 // pred_check
          %p278 = pneg %p189
        $region38: #{transformer_block.1} parent=11 // pred_check_branch
          %280 = sbr.rel (%p278) target = $region40
        $region39: #{transformer_block.1} parent=11 // pred_region
          _
        $region40: #{transformer_block.1} parent=11 // pred_fallthru
          _
      $region12: #{transformer_block.1} parent=5 // pred_fallthru
        _
      %p281 = scmp.lt.s32.totalorder %s16, 2
      // Predicated region
      $region41: #{transformer_block.1} parent=5 // pred_check
        %p282 = pneg %p281
      $region42: #{transformer_block.1} parent=5 // pred_check_branch
        %284 = sbr.rel (%p282) target = $region44
      $region43: #{transformer_block.1} parent=5 // pred_region
        // Predicated region
        $region45: #{transformer_block.1} parent=43 // pred_check
          %p285 = pneg %p36
        $region46: #{transformer_block.1} parent=43 // pred_check_branch
          %287 = sbr.rel (%p285) target = $region48
        $region47: #{transformer_block.1} parent=43 // pred_region
          %s288 = sand.u32 %s26, 1
          %s289 = sand.u32 %s26, 1
          %s290 = smul.addr %s289, 16
          %s291 = scalar_lea.vmem [#allocation3], %s290
          %s292 = smul.addr %s16, 8
          %s293 = scalar_lea.vmem %s0, %s292
          // Predicated region
          $region49: #{transformer_block.1} parent=47 // pred_check
            _
          $region50: #{transformer_block.1} parent=47 // pred_check_branch
            %295 = sbr.rel (0) target = $region52
          $region51: #{transformer_block.1} parent=47 // pred_region
            // Predicated region
            $region53: #{transformer_block.1} parent=51 // pred_check
              _
            $region54: #{transformer_block.1} parent=51 // pred_check_branch
              %297 = sbr.rel (0) target = $region56
            $region55: #{transformer_block.1} parent=51 // pred_region
              // Predicated region
              $region68: #{transformer_block.1} parent=55 // pred_check
                _
              $region69: #{transformer_block.1} parent=55 // pred_check_branch
                %314 = sbr.rel (0) target = $region71
              $region70: #{transformer_block.1} parent=55 // pred_region
                loop: start=0, step=1, limit=1
                $region72: #{transformer_block.1} parent=70 // loop_pre_header
                  _
                $region73: #{transformer_block.1} parent=70 // loop_header
                  %s316 = sphi 0, %s320
                  %p317 = scmp.ge.s32.totalorder %s316, 1
                  %s321 = sphi %s293, %s293
                  %s322 = sphi %s291, %s291
                $region74: #{transformer_block.1} parent=70 // loop_header_branch
                  %319 = sbr.rel (%p317) target = $region78
                $region75: #{transformer_block.1} parent=70 // loop_body
                  %v323 = vld [vmem:[%s321] sm:$0xff]
                  %324 = vst [vmem:[%s322] sm:$0xff] %v323
                  %v325 = vld [vmem:[%s321 + $0x10] sm:$0xff]
                  %326 = vst [vmem:[%s322 + $0x8] sm:$0xff] %v325
                $region76: #{transformer_block.1} parent=70 // loop_footer
                  %s320 = sadd.s32 1, %s316
                $region77: #{transformer_block.1} parent=70 // loop_footer_branch
                  %315 = sbr.rel target = $region73
                $region78: #{transformer_block.1} parent=70 // loop_exit
                  _
              $region71: #{transformer_block.1} parent=55 // pred_fallthru
                _
              // Predicated region
              $region79: #{transformer_block.1} parent=55 // pred_check
                _
              $region80: #{transformer_block.1} parent=55 // pred_check_branch
                %328 = sbr.rel target = $region82
              $region81: #{transformer_block.1} parent=55 // pred_region
                _
              $region82: #{transformer_block.1} parent=55 // pred_fallthru
                _
            $region56: #{transformer_block.1} parent=51 // pred_fallthru
              _
            // Predicated region
            $region57: #{transformer_block.1} parent=51 // pred_check
              _
            $region58: #{transformer_block.1} parent=51 // pred_check_branch
              %299 = sbr.rel target = $region60
            $region59: #{transformer_block.1} parent=51 // pred_region
              loop: start=0, step=1, limit=1
              $region61: #{transformer_block.1} parent=59 // loop_pre_header
                _
              $region62: #{transformer_block.1} parent=59 // loop_header
                %s302 = sphi 0, %s306
                %p303 = scmp.ge.s32.totalorder %s302, 1
                %s307 = sphi %s293, %s293
                %s308 = sphi %s291, %s291
              $region63: #{transformer_block.1} parent=59 // loop_header_branch
                %305 = sbr.rel (%p303) target = $region67
              $region64: #{transformer_block.1} parent=59 // loop_body
                %v309 = vld [vmem:[%s307] sm:$0xff]
                %310 = vst [vmem:[%s308] sm:$0xff] %v309
                %v311 = vld [vmem:[%s307 + $0x10] sm:$0xff]
                %312 = vst [vmem:[%s308 + $0x8] sm:$0xff] %v311
              $region65: #{transformer_block.1} parent=59 // loop_footer
                %s306 = sadd.s32 1, %s302
              $region66: #{transformer_block.1} parent=59 // loop_footer_branch
                %301 = sbr.rel target = $region62
              $region67: #{transformer_block.1} parent=59 // loop_exit
                _
            $region60: #{transformer_block.1} parent=51 // pred_fallthru
              _
          $region52: #{transformer_block.1} parent=47 // pred_fallthru
            _
          %329 = vnop
        $region48: #{transformer_block.1} parent=43 // pred_fallthru
          _
      $region44: #{transformer_block.1} parent=5 // pred_fallthru
        _
      %p330 = scmp.le.s32.totalorder 1, %s16
      %p331 = scmp.lt.s32.totalorder %s16, 3
      %p332 = pnand %p330, %p331
      %p333 = pneg %p332
      // Predicated region
      $region83: #{transformer_block.1} parent=5 // pred_check
        _
      $region84: #{transformer_block.1} parent=5 // pred_check_branch
        %335 = sbr.rel (%p332) target = $region86
      $region85: #{transformer_block.1} parent=5 // pred_region
        %s336 = ssub.s32 %s16, 1
        %s337 = sand.u32 %s29, 1
        %s338 = sand.u32 %s29, 1
        %s339 = smul.addr %s338, 16
        %s340 = scalar_lea.vmem [#allocation3], %s339
        // Predicated region
        $region87: #{transformer_block.1} parent=85 // pred_check
          %p341 = pneg %p42
        $region88: #{transformer_block.1} parent=85 // pred_check_branch
          %343 = sbr.rel (%p341) target = $region90
        $region89: #{transformer_block.1} parent=85 // pred_region
          _
        $region90: #{transformer_block.1} parent=85 // pred_fallthru
          _
        // Predicated region
        $region91: #{transformer_block.1} parent=85 // pred_check
          %p344 = pneg %p63
        $region92: #{transformer_block.1} parent=85 // pred_check_branch
          %346 = sbr.rel (%p344) target = $region94
        $region93: #{transformer_block.1} parent=85 // pred_region
          %347 = dma.done [#allocation5], 3072
        $region94: #{transformer_block.1} parent=85 // pred_fallthru
          _
        // Predicated region
        $region95: #{transformer_block.1} parent=85 // pred_check
          %p348 = pneg %p126
        $region96: #{transformer_block.1} parent=85 // pred_check_branch
          %350 = sbr.rel (%p348) target = $region98
        $region97: #{transformer_block.1} parent=85 // pred_region
          %351 = dma.done [#allocation7], 2048
        $region98: #{transformer_block.1} parent=85 // pred_fallthru
          _
        // Predicated region
        $region99: #{transformer_block.1} parent=85 // pred_check
          %p352 = pneg %p168
        $region100: #{transformer_block.1} parent=85 // pred_check_branch
          %354 = sbr.rel (%p352) target = $region102
        $region101: #{transformer_block.1} parent=85 // pred_region
          %355 = dma.done [#allocation7], 2048
        $region102: #{transformer_block.1} parent=85 // pred_fallthru
          _
        %s356 = sand.u32 %s29, 1
        %s357 = sand.u32 %s29, 1
        %s358 = smul.addr %s357, 16
        %s359 = scalar_lea.vmem [#allocation3], %s358
        %p360 = pneg %p42
        %p361 = pneg %p39
        %p362 = pneg %p63
        %p363 = pneg %p60
        %p364 = pneg %p84
        %p365 = pneg %p81
        %p366 = pneg %p105
        %p367 = pneg %p102
        %p368 = pneg %p126
        %p369 = pneg %p123
        %p370 = pneg %p147
        %p371 = pneg %p144
        %p372 = pneg %p168
        %p373 = pneg %p165
        %p374 = pneg %p189
        %p375 = pneg %p186
        %p376 = pneg %p215
        %p377 = pneg %p212
        %s378 = sand.u32 %s202, 1
        %s379 = sand.u32 %s202, 1
        %s380 = smul.addr %s379, 16
        %s381 = scalar_lea.vmem [#allocation9], %s380
        %v383 = vld [vmem:[%s340] sm:$0xff]
        %v384 = vld [vmem:[%s340 + $0x8] sm:$0xff]
        %v385 = vld [vmem:[%s7] sm:$0x3f]
        %v386 = vpack.c.bf16 %v384, %v383
        %v387 = vld [vmem:[#allocation4] sm:$0xff]
        %v388 = vld [vmem:[#allocation4 + $0x8] sm:$0xf]
        %v389 = vld [vmem:[#allocation4 + $0xc] sm:$0xff]
        %v390 = vld [vmem:[#allocation4 + $0x14] sm:$0xf]
        %v391 = vld [vmem:[#allocation4 + $0x18] sm:$0xff]
        %v392 = vld [vmem:[#allocation4 + $0x20] sm:$0xf]
        %v393 = vld [vmem:[#allocation4 + $0x24] sm:$0xff]
        %v394 = vld [vmem:[#allocation4 + $0x2c] sm:$0xf]
        %v395 = vld [vmem:[#allocation4 + $0x30] sm:$0xff]
        %v396 = vld [vmem:[#allocation4 + $0x38] sm:$0xf]
        %v397 = vld [vmem:[#allocation4 + $0x3c] sm:$0xff]
        %v398 = vld [vmem:[#allocation4 + $0x44] sm:$0xf]
        %v399 = vld [vmem:[#allocation4 + $0x48] sm:$0xff]
        %v400 = vld [vmem:[#allocation4 + $0x50] sm:$0xf]
        %v401 = vld [vmem:[#allocation4 + $0x54] sm:$0xff]
        %v402 = vld [vmem:[#allocation4 + $0x5c] sm:$0xf]
        %v403 = vld [vmem:[#allocation4 + $0x60] sm:$0xff]
        %v404 = vld [vmem:[#allocation4 + $0x68] sm:$0xf]
        %v405 = vld [vmem:[#allocation4 + $0x6c] sm:$0xff]
        %v406 = vld [vmem:[#allocation4 + $0x74] sm:$0xf]
        %v407 = vld [vmem:[#allocation4 + $0x78] sm:$0xff]
        %v408 = vld [vmem:[#allocation4 + $0x80] sm:$0xf]
        %v409 = vld [vmem:[#allocation4 + $0x84] sm:$0xff]
        %v410 = vld [vmem:[#allocation4 + $0x8c] sm:$0xf]
        %v411 = vld [vmem:[#allocation4 + $0x90] sm:$0xff]
        %v412 = vld [vmem:[#allocation4 + $0x98] sm:$0xf]
        %v413 = vld [vmem:[#allocation4 + $0x9c] sm:$0xff]
        %v414 = vld [vmem:[#allocation4 + $0xa4] sm:$0xf]
        %v415 = vld [vmem:[#allocation4 + $0xa8] sm:$0xff]
        %v416 = vld [vmem:[#allocation4 + $0xb0] sm:$0xf]
        %v417 = vld [vmem:[#allocation4 + $0xb4] sm:$0xff]
        %v418 = vld [vmem:[#allocation4 + $0xbc] sm:$0xf]
        %v419 = vld [vmem:[%s2] sm:$0x7]
        %v421 = vlaneseq
        %v422 = vshrl.u32 %v421, 7
        %v423 = vsub.s32 0, %v422
        %v424 = vrot.slane %v419, %v423
        %v425 = vlaneseq
        %v426 = vshrl.u32 %v425, 7
        %v427 = vsub.s32 1, %v426
        %v428 = vrot.slane %v419, %v427
        %v429 = vlaneseq
        %v430 = vshrl.u32 %v429, 7
        %v431 = vsub.s32 2, %v430
        %v432 = vrot.slane %v419, %v431
        %v468 = vunpack.c.l.b16 %v387
        %v469 = vunpack.c.h.b16 %v387
        %v470 = vunpack.c.l.b16 %v388
        %v471 = vunpack.c.l.b16 %v389
        %v472 = vunpack.c.h.b16 %v389
        %v473 = vunpack.c.l.b16 %v390
        %v474 = vunpack.c.l.b16 %v391
        %v475 = vunpack.c.h.b16 %v391
        %v476 = vunpack.c.l.b16 %v392
        %v477 = vunpack.c.l.b16 %v393
        %v478 = vunpack.c.h.b16 %v393
        %v479 = vunpack.c.l.b16 %v394
        %v480 = vunpack.c.l.b16 %v395
        %v481 = vunpack.c.h.b16 %v395
        %v482 = vunpack.c.l.b16 %v396
        %v483 = vunpack.c.l.b16 %v397
        %v484 = vunpack.c.h.b16 %v397
        %v485 = vunpack.c.l.b16 %v398
        %v486 = vunpack.c.l.b16 %v399
        %v487 = vunpack.c.h.b16 %v399
        %v488 = vunpack.c.l.b16 %v400
        %v489 = vunpack.c.l.b16 %v401
        %v490 = vunpack.c.h.b16 %v401
        %v491 = vunpack.c.l.b16 %v402
        %v492 = vunpack.c.l.b16 %v403
        %v493 = vunpack.c.h.b16 %v403
        %v494 = vunpack.c.l.b16 %v404
        %v495 = vunpack.c.l.b16 %v405
        %v496 = vunpack.c.h.b16 %v405
        %v497 = vunpack.c.l.b16 %v406
        %v498 = vunpack.c.l.b16 %v407
        %v499 = vunpack.c.h.b16 %v407
        %v500 = vunpack.c.l.b16 %v408
        %v501 = vunpack.c.l.b16 %v409
        %v502 = vunpack.c.h.b16 %v409
        %v503 = vunpack.c.l.b16 %v410
        %v504 = vunpack.c.l.b16 %v411
        %v505 = vunpack.c.h.b16 %v411
        %v506 = vunpack.c.l.b16 %v412
        %v507 = vunpack.c.l.b16 %v413
        %v508 = vunpack.c.h.b16 %v413
        %v509 = vunpack.c.l.b16 %v414
        %v510 = vunpack.c.l.b16 %v415
        %v511 = vunpack.c.h.b16 %v415
        %v512 = vunpack.c.l.b16 %v416
        %v513 = vunpack.c.l.b16 %v417
        %v514 = vunpack.c.h.b16 %v417
        %v515 = vunpack.c.l.b16 %v418
        %v516 = vpack.c.b16 %v471, %v468
        %v517 = vpack.c.b16 %v472, %v469
        %v518 = vpack.c.b16 %v473, %v470
        %v519 = vpack.c.b16 %v477, %v474
        %v520 = vpack.c.b16 %v478, %v475
        %v521 = vpack.c.b16 %v479, %v476
        %v522 = vpack.c.b16 %v483, %v480
        %v523 = vpack.c.b16 %v484, %v481
        %v524 = vpack.c.b16 %v485, %v482
        %v525 = vpack.c.b16 %v489, %v486
        %v526 = vpack.c.b16 %v490, %v487
        %v527 = vpack.c.b16 %v491, %v488
        %v528 = vpack.c.b16 %v495, %v492
        %v529 = vpack.c.b16 %v496, %v493
        %v530 = vpack.c.b16 %v497, %v494
        %v531 = vpack.c.b16 %v501, %v498
        %v532 = vpack.c.b16 %v502, %v499
        %v533 = vpack.c.b16 %v503, %v500
        %v534 = vpack.c.b16 %v507, %v504
        %v535 = vpack.c.b16 %v508, %v505
        %v536 = vpack.c.b16 %v509, %v506
        %v537 = vpack.c.b16 %v513, %v510
        %v538 = vpack.c.b16 %v514, %v511
        %v539 = vpack.c.b16 %v515, %v512
        %564 = vmatprep.subr.bf16.mxu0 %v517
        %565 = vmatpush1.bf16.msra.mxu0 %v516
        %566 = vmatprep.subr.bf16.mxu0 %v520
        %567 = vmatpush1.bf16.msra.mxu0 %v519
        %568 = vmatprep.subr.bf16.mxu0 %v523
        %569 = vmatpush1.bf16.msra.mxu0 %v522
        %570 = vmatprep.subr.bf16.mxu0 %v526
        %571 = vmatpush1.bf16.msra.mxu0 %v525
        %572 = vmatprep.subr.bf16.mxu0 %v529
        %573 = vmatpush1.bf16.msra.mxu0 %v528
        %574 = vmatprep.subr.bf16.mxu0 %v532
        %575 = vmatpush1.bf16.msra.mxu0 %v531
        %576 = vmatprep.subr.bf16.mxu0 %v535
        %577 = vmatpush1.bf16.msra.mxu0 %v534
        %578 = vmatprep.subr.bf16.mxu0 %v538
        %579 = vmatpush1.bf16.msra.mxu0 %v537
        %580 = vmatprep.subr.bf16.mxu0 0
        %581 = vmatpush1.bf16.msra.mxu0 0
        %582 = vmatprep.subr.bf16.mxu0 0
        %583 = vmatpush1.bf16.msra.mxu0 0
        %584 = vmatprep.subr.bf16.mxu0 0
        %585 = vmatpush1.bf16.msra.mxu0 0
        %586 = vmatprep.subr.bf16.mxu0 0
        %587 = vmatpush1.bf16.msra.mxu0 0
        %588 = vmatprep.subr.bf16.mxu0 0
        %589 = vmatpush1.bf16.msra.mxu0 0
        %590 = vmatprep.subr.bf16.mxu0 0
        %591 = vmatpush1.bf16.msra.mxu0 0
        %592 = vmatprep.subr.bf16.mxu0 0
        %593 = vmatpush1.bf16.msra.mxu0 0
        %594 = vmatprep.subr.bf16.mxu0 0
        %595 = vmatpush1.bf16.msra.mxu0 0
        %596 = vmatprep.mubr.bf16.mxu0 0
        %597 = vmatmul.mubr.bf16.gmra.mrb[0].mxu0 %v386
        %v598 = vpop.f32.mrb[0].mxu0
        %v599 = vadd.f32 %v424, %v598
        %v600 = vpop.f32.mrb[0].mxu0
        %v601 = vadd.f32 %v428, %v600
        %v602 = vpop.f32.mrb[0].mxu0
        %v603 = vadd.f32 %v424, %v602
        %v604 = vpop.f32.mrb[0].mxu0
        %v605 = vadd.f32 %v428, %v604
        %606 = vdwg.mxu0
        %607 = vmatprep.subr.bf16.mxu0 0
        %608 = vmatpush1.bf16.msra.mxu0 %v518
        %609 = vmatprep.subr.bf16.mxu0 0
        %610 = vmatpush1.bf16.msra.mxu0 %v521
        %611 = vmatprep.subr.bf16.mxu0 0
        %612 = vmatpush1.bf16.msra.mxu0 %v524
        %613 = vmatprep.subr.bf16.mxu0 0
        %614 = vmatpush1.bf16.msra.mxu0 %v527
        %615 = vmatprep.subr.bf16.mxu0 0
        %616 = vmatpush1.bf16.msra.mxu0 %v530
        %617 = vmatprep.subr.bf16.mxu0 0
        %618 = vmatpush1.bf16.msra.mxu0 %v533
        %619 = vmatprep.subr.bf16.mxu0 0
        %620 = vmatpush1.bf16.msra.mxu0 %v536
        %621 = vmatprep.subr.bf16.mxu0 0
        %622 = vmatpush1.bf16.msra.mxu0 %v539
        %623 = vmatprep.subr.bf16.mxu0 0
        %624 = vmatpush1.bf16.msra.mxu0 0
        %625 = vmatprep.subr.bf16.mxu0 0
        %626 = vmatpush1.bf16.msra.mxu0 0
        %627 = vmatprep.subr.bf16.mxu0 0
        %628 = vmatpush1.bf16.msra.mxu0 0
        %629 = vmatprep.subr.bf16.mxu0 0
        %630 = vmatpush1.bf16.msra.mxu0 0
        %631 = vmatprep.subr.bf16.mxu0 0
        %632 = vmatpush1.bf16.msra.mxu0 0
        %633 = vmatprep.subr.bf16.mxu0 0
        %634 = vmatpush1.bf16.msra.mxu0 0
        %635 = vmatprep.subr.bf16.mxu0 0
        %636 = vmatpush1.bf16.msra.mxu0 0
        %637 = vmatprep.subr.bf16.mxu0 0
        %638 = vmatpush1.bf16.msra.mxu0 0
        %639 = vmatprep.mubr.bf16.mxu0 0
        %640 = vmatmul.mubr.bf16.gmra.mrb[0].mxu0 %v386
        %v641 = vpop.f32.mrb[0].mxu0
        %v642 = vadd.f32 %v432, %v641
        %v643 = vpop.f32.mrb[0].mxu0
        %v644 = vpop.f32.mrb[0].mxu0
        %v645 = vadd.f32 %v432, %v644
        %v646 = vpop.f32.mrb[0].mxu0
        %647 = vdwg.mxu0
        %v648 = vmul.f32 %v599, 0.17677669
        %v649 = vmul.f32 %v603, 0.17677669
        %v650 = vpack.c.bf16 %v649, %v648
        %v651 = vpack.c.bf16 %v605, %v601
        %v652 = vpack.c.bf16 %v645, %v642
        %vm653 = vcmask 261120
        %v655 = vsel %vm653, %v650, 0
        %v658 = vsel %vm653, %v651, 0
        %660 = vmatprep.subr.bf16.mxu0 0
        %661 = vmatpush1.bf16.xpose.msra.mxu0 %v658
        %662 = vmatprep.subr.bf16.mxu0 0
        %663 = vmatpush1.bf16.xpose.msra.mxu0 0
        %664 = vmatprep.subr.bf16.mxu0 0
        %665 = vmatpush1.bf16.xpose.msra.mxu0 0
        %666 = vmatprep.subr.bf16.mxu0 0
        %667 = vmatpush1.bf16.xpose.msra.mxu0 0
        %668 = vmatprep.subr.bf16.mxu0 0
        %669 = vmatpush1.bf16.xpose.msra.mxu0 0
        %670 = vmatprep.subr.bf16.mxu0 0
        %671 = vmatpush1.bf16.xpose.msra.mxu0 0
        %672 = vmatprep.subr.bf16.mxu0 0
        %673 = vmatpush1.bf16.xpose.msra.mxu0 0
        %674 = vmatprep.subr.bf16.mxu0 0
        %675 = vmatpush1.bf16.xpose.msra.mxu0 0
        %676 = vmatprep.subr.bf16.mxu0 0
        %677 = vmatpush1.bf16.xpose.msra.mxu0 0
        %678 = vmatprep.subr.bf16.mxu0 0
        %679 = vmatpush1.bf16.xpose.msra.mxu0 0
        %680 = vmatprep.subr.bf16.mxu0 0
        %681 = vmatpush1.bf16.xpose.msra.mxu0 0
        %682 = vmatprep.subr.bf16.mxu0 0
        %683 = vmatpush1.bf16.xpose.msra.mxu0 0
        %684 = vmatprep.subr.bf16.mxu0 0
        %685 = vmatpush1.bf16.xpose.msra.mxu0 0
        %686 = vmatprep.subr.bf16.mxu0 0
        %687 = vmatpush1.bf16.xpose.msra.mxu0 0
        %688 = vmatprep.subr.bf16.mxu0 0
        %689 = vmatpush1.bf16.xpose.msra.mxu0 0
        %690 = vmatprep.subr.bf16.mxu0 0
        %691 = vmatpush1.bf16.xpose.msra.mxu0 0
        %692 = vmatprep.mubr.bf16.mxu0 0
        %693 = vmatmul.mubr.bf16.gmra.mrb[0].mxu0 %v655
        %v694 = vpop.f32.mrb[0].mxu0
        %v695 = vadd.f32 0.0, %v694
        %v696 = vpop.f32.mrb[0].mxu0
        %v697 = vpop.f32.mrb[0].mxu0
        %v698 = vadd.f32 0.0, %v697
        %v699 = vpop.f32.mrb[0].mxu0
        %700 = vdwg.mxu0
        %vm701 = vcmask 130048
        %v702 = vsel %vm701, %v695, -inf
        %703 = vmax.xlane.f32.xlu0 %v702
        %v704 = vpop.xlane.xlu0 %703
        %v705 = vsel %vm701, %v698, -inf
        %706 = vmax.xlane.f32.xlu0 %v705
        %v707 = vpop.xlane.xlu0 %706
        %v708 = vsub.f32 %v695, %v704
        %v709 = vsub.f32 %v698, %v707
        %v710 = vmul.f32 %v708, 1.442695
        %v711 = vpow.pop %v710
        %v712 = vmul.f32 %v709, 1.442695
        %v713 = vpow.pop %v712
        %v714 = vsel %vm701, %v711, 0.0
        %715 = vadd.xlane.f32.xlu0 %v714
        %v716 = vpop.xlane.xlu0 %715
        %v717 = vsel %vm701, %v713, 0.0
        %718 = vadd.xlane.f32.xlu0 %v717
        %v719 = vpop.xlane.xlu0 %718
        %v720 = vrcp.pop %v716
        %v721 = vrcp.pop %v719
        %v722 = vmul.f32 %v711, %v720
        %v723 = vmul.f32 %v713, %v721
        %v724 = vpack.c.bf16 %v723, %v722
        %v726 = vsel %vm701, %v724, 0
        %728 = vmatprep.subr.bf16.mxu0 0
        %729 = vmatpush1.bf16.msra.mxu0 %v652
        %730 = vmatprep.subr.bf16.mxu0 0
        %731 = vmatpush1.bf16.msra.mxu0 0
        %732 = vmatprep.subr.bf16.mxu0 0
        %733 = vmatpush1.bf16.msra.mxu0 0
        %734 = vmatprep.subr.bf16.mxu0 0
        %735 = vmatpush1.bf16.msra.mxu0 0
        %736 = vmatprep.subr.bf16.mxu0 0
        %737 = vmatpush1.bf16.msra.mxu0 0
        %738 = vmatprep.subr.bf16.mxu0 0
        %739 = vmatpush1.bf16.msra.mxu0 0
        %740 = vmatprep.subr.bf16.mxu0 0
        %741 = vmatpush1.bf16.msra.mxu0 0
        %742 = vmatprep.subr.bf16.mxu0 0
        %743 = vmatpush1.bf16.msra.mxu0 0
        %744 = vmatprep.subr.bf16.mxu0 0
        %745 = vmatpush1.bf16.msra.mxu0 0
        %746 = vmatprep.subr.bf16.mxu0 0
        %747 = vmatpush1.bf16.msra.mxu0 0
        %748 = vmatprep.subr.bf16.mxu0 0
        %749 = vmatpush1.bf16.msra.mxu0 0
        %750 = vmatprep.subr.bf16.mxu0 0
        %751 = vmatpush1.bf16.msra.mxu0 0
        %752 = vmatprep.subr.bf16.mxu0 0
        %753 = vmatpush1.bf16.msra.mxu0 0
        %754 = vmatprep.subr.bf16.mxu0 0
        %755 = vmatpush1.bf16.msra.mxu0 0
        %756 = vmatprep.subr.bf16.mxu0 0
        %757 = vmatpush1.bf16.msra.mxu0 0
        %758 = vmatprep.subr.bf16.mxu0 0
        %759 = vmatpush1.bf16.msra.mxu0 0
        %760 = vmatprep.mubr.bf16.mxu0 0
        %761 = vmatmul.mubr.bf16.gmra.mrb[0].mxu0 %v726
        %v762 = vpop.f32.mrb[0].mxu0
        %v763 = vadd.f32 0.0, %v762
        %v764 = vpop.f32.mrb[0].mxu0
        %v765 = vpop.f32.mrb[0].mxu0
        %v766 = vadd.f32 0.0, %v765
        %v767 = vpop.f32.mrb[0].mxu0
        %768 = vdwg.mxu0
        %769 = vst.msk [vmem:[#allocation2] sm:$0xff] %vm653, %v763
        %770 = vst.msk [vmem:[#allocation2 + $0x8] sm:$0xff] %vm653, %v766
        %772 = vrot.lane.b32.xlu0 %v650, 96
        %v773 = vpop.permute.xlu0 %772
        %775 = vrot.lane.b32.xlu0 %v651, 96
        %v776 = vpop.permute.xlu0 %775
        %v778 = vsel %vm653, %v773, 0
        %v781 = vsel %vm653, %v776, 0
        %783 = vmatprep.subr.bf16.mxu0 0
        %784 = vmatpush1.bf16.xpose.msra.mxu0 %v781
        %785 = vmatprep.subr.bf16.mxu0 0
        %786 = vmatpush1.bf16.xpose.msra.mxu0 0
        %787 = vmatprep.subr.bf16.mxu0 0
        %788 = vmatpush1.bf16.xpose.msra.mxu0 0
        %789 = vmatprep.subr.bf16.mxu0 0
        %790 = vmatpush1.bf16.xpose.msra.mxu0 0
        %791 = vmatprep.subr.bf16.mxu0 0
        %792 = vmatpush1.bf16.xpose.msra.mxu0 0
        %793 = vmatprep.subr.bf16.mxu0 0
        %794 = vmatpush1.bf16.xpose.msra.mxu0 0
        %795 = vmatprep.subr.bf16.mxu0 0
        %796 = vmatpush1.bf16.xpose.msra.mxu0 0
        %797 = vmatprep.subr.bf16.mxu0 0
        %798 = vmatpush1.bf16.xpose.msra.mxu0 0
        %799 = vmatprep.subr.bf16.mxu0 0
        %800 = vmatpush1.bf16.xpose.msra.mxu0 0
        %801 = vmatprep.subr.bf16.mxu0 0
        %802 = vmatpush1.bf16.xpose.msra.mxu0 0
        %803 = vmatprep.subr.bf16.mxu0 0
        %804 = vmatpush1.bf16.xpose.msra.mxu0 0
        %805 = vmatprep.subr.bf16.mxu0 0
        %806 = vmatpush1.bf16.xpose.msra.mxu0 0
        %807 = vmatprep.subr.bf16.mxu0 0
        %808 = vmatpush1.bf16.xpose.msra.mxu0 0
        %809 = vmatprep.subr.bf16.mxu0 0
        %810 = vmatpush1.bf16.xpose.msra.mxu0 0
        %811 = vmatprep.subr.bf16.mxu0 0
        %812 = vmatpush1.bf16.xpose.msra.mxu0 0
        %813 = vmatprep.subr.bf16.mxu0 0
        %814 = vmatpush1.bf16.xpose.msra.mxu0 0
        %815 = vmatprep.mubr.bf16.mxu0 0
        %816 = vmatmul.mubr.bf16.gmra.mrb[0].mxu0 %v778
        %v817 = vpop.f32.mrb[0].mxu0
        %v818 = vadd.f32 0.0, %v817
        %v819 = vpop.f32.mrb[0].mxu0
        %v820 = vpop.f32.mrb[0].mxu0
        %v821 = vadd.f32 0.0, %v820
        %v822 = vpop.f32.mrb[0].mxu0
        %823 = vdwg.mxu0
        %v824 = vsel %vm701, %v818, -inf
        %825 = vmax.xlane.f32.xlu0 %v824
        %v826 = vpop.xlane.xlu0 %825
        %v827 = vsel %vm701, %v821, -inf
        %828 = vmax.xlane.f32.xlu0 %v827
        %v829 = vpop.xlane.xlu0 %828
        %v830 = vsub.f32 %v818, %v826
        %v831 = vsub.f32 %v821, %v829
        %v832 = vmul.f32 %v830, 1.442695
        %v833 = vpow.pop %v832
        %v834 = vmul.f32 %v831, 1.442695
        %v835 = vpow.pop %v834
        %v836 = vsel %vm701, %v833, 0.0
        %837 = vadd.xlane.f32.xlu0 %v836
        %v838 = vpop.xlane.xlu0 %837
        %v839 = vsel %vm701, %v835, 0.0
        %840 = vadd.xlane.f32.xlu0 %v839
        %v841 = vpop.xlane.xlu0 %840
        %v842 = vrcp.pop %v838
        %v843 = vrcp.pop %v841
        %v844 = vmul.f32 %v833, %v842
        %v845 = vmul.f32 %v835, %v843
        %v846 = vpack.c.bf16 %v845, %v844
        %848 = vrot.lane.b32.xlu0 %v652, 96
        %v849 = vpop.permute.xlu0 %848
        %v852 = vsel %vm701, %v846, 0
        %854 = vmatprep.subr.bf16.mxu0 0
        %855 = vmatpush1.bf16.msra.mxu0 %v849
        %856 = vmatprep.subr.bf16.mxu0 0
        %857 = vmatpush1.bf16.msra.mxu0 0
        %858 = vmatprep.subr.bf16.mxu0 0
        %859 = vmatpush1.bf16.msra.mxu0 0
        %860 = vmatprep.subr.bf16.mxu0 0
        %861 = vmatpush1.bf16.msra.mxu0 0
        %862 = vmatprep.subr.bf16.mxu0 0
        %863 = vmatpush1.bf16.msra.mxu0 0
        %864 = vmatprep.subr.bf16.mxu0 0
        %865 = vmatpush1.bf16.msra.mxu0 0
        %866 = vmatprep.subr.bf16.mxu0 0
        %867 = vmatpush1.bf16.msra.mxu0 0
        %868 = vmatprep.subr.bf16.mxu0 0
        %869 = vmatpush1.bf16.msra.mxu0 0
        %870 = vmatprep.subr.bf16.mxu0 0
        %871 = vmatpush1.bf16.msra.mxu0 0
        %872 = vmatprep.subr.bf16.mxu0 0
        %873 = vmatpush1.bf16.msra.mxu0 0
        %874 = vmatprep.subr.bf16.mxu0 0
        %875 = vmatpush1.bf16.msra.mxu0 0
        %876 = vmatprep.subr.bf16.mxu0 0
        %877 = vmatpush1.bf16.msra.mxu0 0
        %878 = vmatprep.subr.bf16.mxu0 0
        %879 = vmatpush1.bf16.msra.mxu0 0
        %880 = vmatprep.subr.bf16.mxu0 0
        %881 = vmatpush1.bf16.msra.mxu0 0
        %882 = vmatprep.subr.bf16.mxu0 0
        %883 = vmatpush1.bf16.msra.mxu0 0
        %884 = vmatprep.subr.bf16.mxu0 0
        %885 = vmatpush1.bf16.msra.mxu0 0
        %886 = vmatprep.mubr.bf16.mxu0 0
        %887 = vmatmul.mubr.bf16.gmra.mrb[0].mxu0 %v852
        %v888 = vpop.f32.mrb[0].mxu0
        %v889 = vadd.f32 0.0, %v888
        %v890 = vpop.f32.mrb[0].mxu0
        %v891 = vpop.f32.mrb[0].mxu0
        %v892 = vadd.f32 0.0, %v891
        %v893 = vpop.f32.mrb[0].mxu0
        %894 = vdwg.mxu0
        %897 = vrot.lane.b32.xlu0 %v889, 32
        %v898 = vpop.permute.xlu0 %897
        %899 = vrot.lane.b32.xlu0 %v892, 32
        %v900 = vpop.permute.xlu0 %899
        %vm903 = vcmask 523520
        %904 = vst.msk [vmem:[#allocation2] sm:$0xff] %vm903, %v898
        %905 = vst.msk [vmem:[#allocation2 + $0x8] sm:$0xff] %vm903, %v900
        %906 = vrot.lane.b32.xlu0 %v650, 64
        %v907 = vpop.permute.xlu0 %906
        %908 = vrot.lane.b32.xlu0 %v651, 64
        %v909 = vpop.permute.xlu0 %908
        %v911 = vsel %vm653, %v907, 0
        %v914 = vsel %vm653, %v909, 0
        %916 = vmatprep.subr.bf16.mxu0 0
        %917 = vmatpush1.bf16.xpose.msra.mxu0 %v914
        %918 = vmatprep.subr.bf16.mxu0 0
        %919 = vmatpush1.bf16.xpose.msra.mxu0 0
        %920 = vmatprep.subr.bf16.mxu0 0
        %921 = vmatpush1.bf16.xpose.msra.mxu0 0
        %922 = vmatprep.subr.bf16.mxu0 0
        %923 = vmatpush1.bf16.xpose.msra.mxu0 0
        %924 = vmatprep.subr.bf16.mxu0 0
        %925 = vmatpush1.bf16.xpose.msra.mxu0 0
        %926 = vmatprep.subr.bf16.mxu0 0
        %927 = vmatpush1.bf16.xpose.msra.mxu0 0
        %928 = vmatprep.subr.bf16.mxu0 0
        %929 = vmatpush1.bf16.xpose.msra.mxu0 0
        %930 = vmatprep.subr.bf16.mxu0 0
        %931 = vmatpush1.bf16.xpose.msra.mxu0 0
        %932 = vmatprep.subr.bf16.mxu0 0
        %933 = vmatpush1.bf16.xpose.msra.mxu0 0
        %934 = vmatprep.subr.bf16.mxu0 0
        %935 = vmatpush1.bf16.xpose.msra.mxu0 0
        %936 = vmatprep.subr.bf16.mxu0 0
        %937 = vmatpush1.bf16.xpose.msra.mxu0 0
        %938 = vmatprep.subr.bf16.mxu0 0
        %939 = vmatpush1.bf16.xpose.msra.mxu0 0
        %940 = vmatprep.subr.bf16.mxu0 0
        %941 = vmatpush1.bf16.xpose.msra.mxu0 0
        %942 = vmatprep.subr.bf16.mxu0 0
        %943 = vmatpush1.bf16.xpose.msra.mxu0 0
        %944 = vmatprep.subr.bf16.mxu0 0
        %945 = vmatpush1.bf16.xpose.msra.mxu0 0
        %946 = vmatprep.subr.bf16.mxu0 0
        %947 = vmatpush1.bf16.xpose.msra.mxu0 0
        %948 = vmatprep.mubr.bf16.mxu0 0
        %949 = vmatmul.mubr.bf16.gmra.mrb[0].mxu0 %v911
        %v950 = vpop.f32.mrb[0].mxu0
        %v951 = vadd.f32 0.0, %v950
        %v952 = vpop.f32.mrb[0].mxu0
        %v953 = vpop.f32.mrb[0].mxu0
        %v954 = vadd.f32 0.0, %v953
        %v955 = vpop.f32.mrb[0].mxu0
        %956 = vdwg.mxu0
        %v957 = vsel %vm701, %v951, -inf
        %958 = vmax.xlane.f32.xlu0 %v957
        %v959 = vpop.xlane.xlu0 %958
        %v960 = vsel %vm701, %v954, -inf
        %961 = vmax.xlane.f32.xlu0 %v960
        %v962 = vpop.xlane.xlu0 %961
        %v963 = vsub.f32 %v951, %v959
        %v964 = vsub.f32 %v954, %v962
        %v965 = vmul.f32 %v963, 1.442695
        %v966 = vpow.pop %v965
        %v967 = vmul.f32 %v964, 1.442695
        %v968 = vpow.pop %v967
        %v969 = vsel %vm701, %v966, 0.0
        %970 = vadd.xlane.f32.xlu0 %v969
        %v971 = vpop.xlane.xlu0 %970
        %v972 = vsel %vm701, %v968, 0.0
        %973 = vadd.xlane.f32.xlu0 %v972
        %v974 = vpop.xlane.xlu0 %973
        %v975 = vrcp.pop %v971
        %v976 = vrcp.pop %v974
        %v977 = vmul.f32 %v966, %v975
        %v978 = vmul.f32 %v968, %v976
        %v979 = vpack.c.bf16 %v978, %v977
        %980 = vrot.lane.b32.xlu0 %v652, 64
        %v981 = vpop.permute.xlu0 %980
        %v984 = vsel %vm701, %v979, 0
        %986 = vmatprep.subr.bf16.mxu0 0
        %987 = vmatpush1.bf16.msra.mxu0 %v981
        %988 = vmatprep.subr.bf16.mxu0 0
        %989 = vmatpush1.bf16.msra.mxu0 0
        %990 = vmatprep.subr.bf16.mxu0 0
        %991 = vmatpush1.bf16.msra.mxu0 0
        %992 = vmatprep.subr.bf16.mxu0 0
        %993 = vmatpush1.bf16.msra.mxu0 0
        %994 = vmatprep.subr.bf16.mxu0 0
        %995 = vmatpush1.bf16.msra.mxu0 0
        %996 = vmatprep.subr.bf16.mxu0 0
        %997 = vmatpush1.bf16.msra.mxu0 0
        %998 = vmatprep.subr.bf16.mxu0 0
        %999 = vmatpush1.bf16.msra.mxu0 0
        %1000 = vmatprep.subr.bf16.mxu0 0
        %1001 = vmatpush1.bf16.msra.mxu0 0
        %1002 = vmatprep.subr.bf16.mxu0 0
        %1003 = vmatpush1.bf16.msra.mxu0 0
        %1004 = vmatprep.subr.bf16.mxu0 0
        %1005 = vmatpush1.bf16.msra.mxu0 0
        %1006 = vmatprep.subr.bf16.mxu0 0
        %1007 = vmatpush1.bf16.msra.mxu0 0
        %1008 = vmatprep.subr.bf16.mxu0 0
        %1009 = vmatpush1.bf16.msra.mxu0 0
        %1010 = vmatprep.subr.bf16.mxu0 0
        %1011 = vmatpush1.bf16.msra.mxu0 0
        %1012 = vmatprep.subr.bf16.mxu0 0
        %1013 = vmatpush1.bf16.msra.mxu0 0
        %1014 = vmatprep.subr.bf16.mxu0 0
        %1015 = vmatpush1.bf16.msra.mxu0 0
        %1016 = vmatprep.subr.bf16.mxu0 0
        %1017 = vmatpush1.bf16.msra.mxu0 0
        %1018 = vmatprep.mubr.bf16.mxu0 0
        %1019 = vmatmul.mubr.bf16.gmra.mrb[0].mxu0 %v984
        %v1020 = vpop.f32.mrb[0].mxu0
        %v1021 = vadd.f32 0.0, %v1020
        %v1022 = vpop.f32.mrb[0].mxu0
        %v1023 = vpop.f32.mrb[0].mxu0
        %v1024 = vadd.f32 0.0, %v1023
        %v1025 = vpop.f32.mrb[0].mxu0
        %1026 = vdwg.mxu0
        %1029 = vrot.lane.b32.xlu0 %v1021, 64
        %v1030 = vpop.permute.xlu0 %1029
        %1031 = vrot.lane.b32.xlu0 %v1024, 64
        %v1032 = vpop.permute.xlu0 %1031
        %vm1035 = vcmask 785920
        %1036 = vst.msk [vmem:[#allocation2] sm:$0xff] %vm1035, %v1030
        %1037 = vst.msk [vmem:[#allocation2 + $0x8] sm:$0xff] %vm1035, %v1032
        %1038 = vrot.lane.b32.xlu0 %v650, 32
        %v1039 = vpop.permute.xlu0 %1038
        %1040 = vrot.lane.b32.xlu0 %v651, 32
        %v1041 = vpop.permute.xlu0 %1040
        %v1043 = vsel %vm653, %v1039, 0
        %v1046 = vsel %vm653, %v1041, 0
        %1048 = vmatprep.subr.bf16.mxu0 0
        %1049 = vmatpush1.bf16.xpose.msra.mxu0 %v1046
        %1050 = vmatprep.subr.bf16.mxu0 0
        %1051 = vmatpush1.bf16.xpose.msra.mxu0 0
        %1052 = vmatprep.subr.bf16.mxu0 0
        %1053 = vmatpush1.bf16.xpose.msra.mxu0 0
        %1054 = vmatprep.subr.bf16.mxu0 0
        %1055 = vmatpush1.bf16.xpose.msra.mxu0 0
        %1056 = vmatprep.subr.bf16.mxu0 0
        %1057 = vmatpush1.bf16.xpose.msra.mxu0 0
        %1058 = vmatprep.subr.bf16.mxu0 0
        %1059 = vmatpush1.bf16.xpose.msra.mxu0 0
        %1060 = vmatprep.subr.bf16.mxu0 0
        %1061 = vmatpush1.bf16.xpose.msra.mxu0 0
        %1062 = vmatprep.subr.bf16.mxu0 0
        %1063 = vmatpush1.bf16.xpose.msra.mxu0 0
        %1064 = vmatprep.subr.bf16.mxu0 0
        %1065 = vmatpush1.bf16.xpose.msra.mxu0 0
        %1066 = vmatprep.subr.bf16.mxu0 0
        %1067 = vmatpush1.bf16.xpose.msra.mxu0 0
        %1068 = vmatprep.subr.bf16.mxu0 0
        %1069 = vmatpush1.bf16.xpose.msra.mxu0 0
        %1070 = vmatprep.subr.bf16.mxu0 0
        %1071 = vmatpush1.bf16.xpose.msra.mxu0 0
        %1072 = vmatprep.subr.bf16.mxu0 0
        %1073 = vmatpush1.bf16.xpose.msra.mxu0 0
        %1074 = vmatprep.subr.bf16.mxu0 0
        %1075 = vmatpush1.bf16.xpose.msra.mxu0 0
        %1076 = vmatprep.subr.bf16.mxu0 0
        %1077 = vmatpush1.bf16.xpose.msra.mxu0 0
        %1078 = vmatprep.subr.bf16.mxu0 0
        %1079 = vmatpush1.bf16.xpose.msra.mxu0 0
        %1080 = vmatprep.mubr.bf16.mxu0 0
        %1081 = vmatmul.mubr.bf16.gmra.mrb[0].mxu0 %v1043
        %v1082 = vpop.f32.mrb[0].mxu0
        %v1083 = vadd.f32 0.0, %v1082
        %v1084 = vpop.f32.mrb[0].mxu0
        %v1085 = vpop.f32.mrb[0].mxu0
        %v1086 = vadd.f32 0.0, %v1085
        %v1087 = vpop.f32.mrb[0].mxu0
        %1088 = vdwg.mxu0
        %v1089 = vsel %vm701, %v1083, -inf
        %1090 = vmax.xlane.f32.xlu0 %v1089
        %v1091 = vpop.xlane.xlu0 %1090
        %v1092 = vsel %vm701, %v1086, -inf
        %1093 = vmax.xlane.f32.xlu0 %v1092
        %v1094 = vpop.xlane.xlu0 %1093
        %v1095 = vsub.f32 %v1083, %v1091
        %v1096 = vsub.f32 %v1086, %v1094
        %v1097 = vmul.f32 %v1095, 1.442695
        %v1098 = vpow.pop %v1097
        %v1099 = vmul.f32 %v1096, 1.442695
        %v1100 = vpow.pop %v1099
        %v1101 = vsel %vm701, %v1098, 0.0
        %1102 = vadd.xlane.f32.xlu0 %v1101
        %v1103 = vpop.xlane.xlu0 %1102
        %v1104 = vsel %vm701, %v1100, 0.0
        %1105 = vadd.xlane.f32.xlu0 %v1104
        %v1106 = vpop.xlane.xlu0 %1105
        %v1107 = vrcp.pop %v1103
        %v1108 = vrcp.pop %v1106
        %v1109 = vmul.f32 %v1098, %v1107
        %v1110 = vmul.f32 %v1100, %v1108
        %v1111 = vpack.c.bf16 %v1110, %v1109
        %1112 = vrot.lane.b32.xlu0 %v652, 32
        %v1113 = vpop.permute.xlu0 %1112
        %v1116 = vsel %vm701, %v1111, 0
        %1118 = vmatprep.subr.bf16.mxu0 0
        %1119 = vmatpush1.bf16.msra.mxu0 %v1113
        %1120 = vmatprep.subr.bf16.mxu0 0
        %1121 = vmatpush1.bf16.msra.mxu0 0
        %1122 = vmatprep.subr.bf16.mxu0 0
        %1123 = vmatpush1.bf16.msra.mxu0 0
        %1124 = vmatprep.subr.bf16.mxu0 0
        %1125 = vmatpush1.bf16.msra.mxu0 0
        %1126 = vmatprep.subr.bf16.mxu0 0
        %1127 = vmatpush1.bf16.msra.mxu0 0
        %1128 = vmatprep.subr.bf16.mxu0 0
        %1129 = vmatpush1.bf16.msra.mxu0 0
        %1130 = vmatprep.subr.bf16.mxu0 0
        %1131 = vmatpush1.bf16.msra.mxu0 0
        %1132 = vmatprep.subr.bf16.mxu0 0
        %1133 = vmatpush1.bf16.msra.mxu0 0
        %1134 = vmatprep.subr.bf16.mxu0 0
        %1135 = vmatpush1.bf16.msra.mxu0 0
        %1136 = vmatprep.subr.bf16.mxu0 0
        %1137 = vmatpush1.bf16.msra.mxu0 0
        %1138 = vmatprep.subr.bf16.mxu0 0
        %1139 = vmatpush1.bf16.msra.mxu0 0
        %1140 = vmatprep.subr.bf16.mxu0 0
        %1141 = vmatpush1.bf16.msra.mxu0 0
        %1142 = vmatprep.subr.bf16.mxu0 0
        %1143 = vmatpush1.bf16.msra.mxu0 0
        %1144 = vmatprep.subr.bf16.mxu0 0
        %1145 = vmatpush1.bf16.msra.mxu0 0
        %1146 = vmatprep.subr.bf16.mxu0 0
        %1147 = vmatpush1.bf16.msra.mxu0 0
        %1148 = vmatprep.subr.bf16.mxu0 0
        %1149 = vmatpush1.bf16.msra.mxu0 0
        %1150 = vmatprep.mubr.bf16.mxu0 0
        %1151 = vmatmul.mubr.bf16.gmra.mrb[0].mxu0 %v1116
        %v1152 = vpop.f32.mrb[0].mxu0
        %v1153 = vadd.f32 0.0, %v1152
        %v1154 = vpop.f32.mrb[0].mxu0
        %v1155 = vpop.f32.mrb[0].mxu0
        %v1156 = vadd.f32 0.0, %v1155
        %v1157 = vpop.f32.mrb[0].mxu0
        %1158 = vdwg.mxu0
        %1161 = vrot.lane.b32.xlu0 %v1153, 96
        %v1162 = vpop.permute.xlu0 %1161
        %1163 = vrot.lane.b32.xlu0 %v1156, 96
        %v1164 = vpop.permute.xlu0 %1163
        %vm1167 = vcmask 1048320
        %1168 = vst.msk [vmem:[#allocation2] sm:$0xff] %vm1167, %v1162
        %1169 = vst.msk [vmem:[#allocation2 + $0x8] sm:$0xff] %vm1167, %v1164
        %v1170 = vld [vmem:[#allocation2] sm:$0xff]
        %v1171 = vld [vmem:[#allocation2 + $0x8] sm:$0xff]
        %v1172 = vpack.c.bf16 %v1171, %v1170
        %v1173 = vld [vmem:[%s3] sm:$0xf]
        %v1174 = vld [vmem:[%s3 + $0x4] sm:$0xf]
        %v1175 = vld [vmem:[%s3 + $0x8] sm:$0xf]
        %v1176 = vld [vmem:[%s3 + $0xc] sm:$0xf]
        %v1177 = vld [vmem:[%s3 + $0x10] sm:$0xf]
        %v1178 = vld [vmem:[%s3 + $0x14] sm:$0xf]
        %v1179 = vld [vmem:[%s3 + $0x18] sm:$0xf]
        %v1180 = vld [vmem:[%s3 + $0x1c] sm:$0xf]
        %v1181 = vld [vmem:[%s3 + $0x20] sm:$0xf]
        %v1182 = vld [vmem:[%s3 + $0x24] sm:$0xf]
        %v1183 = vld [vmem:[%s3 + $0x28] sm:$0xf]
        %v1184 = vld [vmem:[%s3 + $0x2c] sm:$0xf]
        %v1185 = vld [vmem:[%s3 + $0x30] sm:$0xf]
        %v1186 = vld [vmem:[%s3 + $0x34] sm:$0xf]
        %v1187 = vld [vmem:[%s3 + $0x38] sm:$0xf]
        %v1188 = vld [vmem:[%s3 + $0x3c] sm:$0xf]
        %v1189 = vlaneseq
        %v1190 = vshrl.u32 %v1189, 7
        %v1191 = vsub.s32 0, %v1190
        %v1192 = vrot.slane %v385, %v1191
        %v1209 = vunpack.c.l.b16 %v1173
        %v1210 = vunpack.c.l.b16 %v1174
        %v1211 = vunpack.c.l.b16 %v1175
        %v1212 = vunpack.c.l.b16 %v1176
        %v1213 = vunpack.c.l.b16 %v1177
        %v1214 = vunpack.c.l.b16 %v1178
        %v1215 = vunpack.c.l.b16 %v1179
        %v1216 = vunpack.c.l.b16 %v1180
        %v1217 = vunpack.c.l.b16 %v1181
        %v1218 = vunpack.c.l.b16 %v1182
        %v1219 = vunpack.c.l.b16 %v1183
        %v1220 = vunpack.c.l.b16 %v1184
        %v1221 = vunpack.c.l.b16 %v1185
        %v1222 = vunpack.c.l.b16 %v1186
        %v1223 = vunpack.c.l.b16 %v1187
        %v1224 = vunpack.c.l.b16 %v1188
        %v1225 = vpack.c.b16 %v1210, %v1209
        %v1226 = vpack.c.b16 %v1212, %v1211
        %v1227 = vpack.c.b16 %v1214, %v1213
        %v1228 = vpack.c.b16 %v1216, %v1215
        %v1229 = vpack.c.b16 %v1218, %v1217
        %v1230 = vpack.c.b16 %v1220, %v1219
        %v1231 = vpack.c.b16 %v1222, %v1221
        %v1232 = vpack.c.b16 %v1224, %v1223
        %1241 = vmatprep.subr.bf16.mxu0 0
        %1242 = vmatpush1.bf16.msra.mxu0 %v1225
        %1243 = vmatprep.subr.bf16.mxu0 0
        %1244 = vmatpush1.bf16.msra.mxu0 %v1226
        %1245 = vmatprep.subr.bf16.mxu0 0
        %1246 = vmatpush1.bf16.msra.mxu0 %v1227
        %1247 = vmatprep.subr.bf16.mxu0 0
        %1248 = vmatpush1.bf16.msra.mxu0 %v1228
        %1249 = vmatprep.subr.bf16.mxu0 0
        %1250 = vmatpush1.bf16.msra.mxu0 %v1229
        %1251 = vmatprep.subr.bf16.mxu0 0
        %1252 = vmatpush1.bf16.msra.mxu0 %v1230
        %1253 = vmatprep.subr.bf16.mxu0 0
        %1254 = vmatpush1.bf16.msra.mxu0 %v1231
        %1255 = vmatprep.subr.bf16.mxu0 0
        %1256 = vmatpush1.bf16.msra.mxu0 %v1232
        %1257 = vmatprep.subr.bf16.mxu0 0
        %1258 = vmatpush1.bf16.msra.mxu0 0
        %1259 = vmatprep.subr.bf16.mxu0 0
        %1260 = vmatpush1.bf16.msra.mxu0 0
        %1261 = vmatprep.subr.bf16.mxu0 0
        %1262 = vmatpush1.bf16.msra.mxu0 0
        %1263 = vmatprep.subr.bf16.mxu0 0
        %1264 = vmatpush1.bf16.msra.mxu0 0
        %1265 = vmatprep.subr.bf16.mxu0 0
        %1266 = vmatpush1.bf16.msra.mxu0 0
        %1267 = vmatprep.subr.bf16.mxu0 0
        %1268 = vmatpush1.bf16.msra.mxu0 0
        %1269 = vmatprep.subr.bf16.mxu0 0
        %1270 = vmatpush1.bf16.msra.mxu0 0
        %1271 = vmatprep.subr.bf16.mxu0 0
        %1272 = vmatpush1.bf16.msra.mxu0 0
        %1273 = vmatprep.mubr.bf16.mxu0 0
        %1274 = vmatmul.mubr.bf16.gmra.mrb[0].mxu0 %v1172
        %v1275 = vpop.f32.mrb[0].mxu0
        %v1276 = vadd.f32 %v1192, %v1275
        %v1277 = vpop.f32.mrb[0].mxu0
        %v1278 = vpop.f32.mrb[0].mxu0
        %v1279 = vadd.f32 %v1192, %v1278
        %v1280 = vpop.f32.mrb[0].mxu0
        %1281 = vdwg.mxu0
        %v1282 = vadd.f32 %v383, %v1276
        %v1283 = vadd.f32 %v384, %v1279
        %1284 = vadd.xlane.f32.xlu0 %v1282
        %v1285 = vpop.xlane.xlu0 %1284
        %1286 = vadd.xlane.f32.xlu0 %v1283
        %v1287 = vpop.xlane.xlu0 %1286
        %v1288 = vrcp.pop 128.0
        %v1289 = vmul.f32 %v1285, %v1288
        %v1290 = vmul.f32 %v1287, %v1288
        %v1291 = vsub.f32 %v1282, %v1289
        %v1292 = vsub.f32 %v1283, %v1290
        %v1293 = vmul.f32 %v1291, %v1291
        %v1294 = vmul.f32 %v1292, %v1292
        %1295 = vadd.xlane.f32.xlu0 %v1293
        %v1296 = vpop.xlane.xlu0 %1295
        %1297 = vadd.xlane.f32.xlu0 %v1294
        %v1298 = vpop.xlane.xlu0 %1297
        %v1299 = vmul.f32 %v1296, %v1288
        %v1300 = vmul.f32 %v1298, %v1288
        %v1301 = vadd.f32 %v1299, 1e-05
        %v1302 = vadd.f32 %v1300, 1e-05
        %v1303 = vrsqrt.pop %v1301
        %v1304 = vrsqrt.pop %v1302
        %v1305 = vmul.f32 %v1291, %v1303
        %v1306 = vmul.f32 %v1292, %v1304
        %v1307 = vlaneseq
        %v1308 = vshrl.u32 %v1307, 7
        %v1309 = vsub.s32 1, %v1308
        %v1310 = vrot.slane %v385, %v1309
        %v1311 = vmul.f32 %v1305, %v1310
        %v1312 = vmul.f32 %v1306, %v1310
        %v1313 = vlaneseq
        %v1314 = vshrl.u32 %v1313, 7
        %v1315 = vsub.s32 2, %v1314
        %v1316 = vrot.slane %v385, %v1315
        %v1317 = vadd.f32 %v1311, %v1316
        %v1318 = vadd.f32 %v1312, %v1316
        %v1319 = vpack.c.bf16 %v1318, %v1317
        %v1320 = vld [vmem:[#allocation6] sm:$0xff]
        %v1321 = vld [vmem:[#allocation6 + $0x8] sm:$0xff]
        %v1322 = vld [vmem:[#allocation6 + $0x10] sm:$0xff]
        %v1323 = vld [vmem:[#allocation6 + $0x18] sm:$0xff]
        %v1324 = vld [vmem:[#allocation6 + $0x20] sm:$0xff]
        %v1325 = vld [vmem:[#allocation6 + $0x28] sm:$0xff]
        %v1326 = vld [vmem:[#allocation6 + $0x30] sm:$0xff]
        %v1327 = vld [vmem:[#allocation6 + $0x38] sm:$0xff]
        %v1328 = vld [vmem:[#allocation6 + $0x40] sm:$0xff]
        %v1329 = vld [vmem:[#allocation6 + $0x48] sm:$0xff]
        %v1330 = vld [vmem:[#allocation6 + $0x50] sm:$0xff]
        %v1331 = vld [vmem:[#allocation6 + $0x58] sm:$0xff]
        %v1332 = vld [vmem:[#allocation6 + $0x60] sm:$0xff]
        %v1333 = vld [vmem:[#allocation6 + $0x68] sm:$0xff]
        %v1334 = vld [vmem:[#allocation6 + $0x70] sm:$0xff]
        %v1335 = vld [vmem:[#allocation6 + $0x78] sm:$0xff]
        %v1336 = vld [vmem:[%s5] sm:$0x3]
        %v1338 = vlaneseq
        %v1339 = vshrl.u32 %v1338, 7
        %v1340 = vsub.s32 0, %v1339
        %v1341 = vrot.slane %v1336, %v1340
        %v1342 = vlaneseq
        %v1343 = vshrl.u32 %v1342, 7
        %v1344 = vsub.s32 1, %v1343
        %v1345 = vrot.slane %v1336, %v1344
        %v1364 = vunpack.c.l.b16 %v1320
        %v1365 = vunpack.c.h.b16 %v1320
        %v1366 = vunpack.c.l.b16 %v1321
        %v1367 = vunpack.c.h.b16 %v1321
        %v1368 = vunpack.c.l.b16 %v1322
        %v1369 = vunpack.c.h.b16 %v1322
        %v1370 = vunpack.c.l.b16 %v1323
        %v1371 = vunpack.c.h.b16 %v1323
        %v1372 = vunpack.c.l.b16 %v1324
        %v1373 = vunpack.c.h.b16 %v1324
        %v1374 = vunpack.c.l.b16 %v1325
        %v1375 = vunpack.c.h.b16 %v1325
        %v1376 = vunpack.c.l.b16 %v1326
        %v1377 = vunpack.c.h.b16 %v1326
        %v1378 = vunpack.c.l.b16 %v1327
        %v1379 = vunpack.c.h.b16 %v1327
        %v1380 = vunpack.c.l.b16 %v1328
        %v1381 = vunpack.c.h.b16 %v1328
        %v1382 = vunpack.c.l.b16 %v1329
        %v1383 = vunpack.c.h.b16 %v1329
        %v1384 = vunpack.c.l.b16 %v1330
        %v1385 = vunpack.c.h.b16 %v1330
        %v1386 = vunpack.c.l.b16 %v1331
        %v1387 = vunpack.c.h.b16 %v1331
        %v1388 = vunpack.c.l.b16 %v1332
        %v1389 = vunpack.c.h.b16 %v1332
        %v1390 = vunpack.c.l.b16 %v1333
        %v1391 = vunpack.c.h.b16 %v1333
        %v1392 = vunpack.c.l.b16 %v1334
        %v1393 = vunpack.c.h.b16 %v1334
        %v1394 = vunpack.c.l.b16 %v1335
        %v1395 = vunpack.c.h.b16 %v1335
        %v1396 = vpack.c.b16 %v1366, %v1364
        %v1397 = vpack.c.b16 %v1367, %v1365
        %v1398 = vpack.c.b16 %v1370, %v1368
        %v1399 = vpack.c.b16 %v1371, %v1369
        %v1400 = vpack.c.b16 %v1374, %v1372
        %v1401 = vpack.c.b16 %v1375, %v1373
        %v1402 = vpack.c.b16 %v1378, %v1376
        %v1403 = vpack.c.b16 %v1379, %v1377
        %v1404 = vpack.c.b16 %v1382, %v1380
        %v1405 = vpack.c.b16 %v1383, %v1381
        %v1406 = vpack.c.b16 %v1386, %v1384
        %v1407 = vpack.c.b16 %v1387, %v1385
        %v1408 = vpack.c.b16 %v1390, %v1388
        %v1409 = vpack.c.b16 %v1391, %v1389
        %v1410 = vpack.c.b16 %v1394, %v1392
        %v1411 = vpack.c.b16 %v1395, %v1393
        %1428 = vmatprep.subr.bf16.mxu0 %v1397
        %1429 = vmatpush1.bf16.msra.mxu0 %v1396
        %1430 = vmatprep.subr.bf16.mxu0 %v1399
        %1431 = vmatpush1.bf16.msra.mxu0 %v1398
        %1432 = vmatprep.subr.bf16.mxu0 %v1401
        %1433 = vmatpush1.bf16.msra.mxu0 %v1400
        %1434 = vmatprep.subr.bf16.mxu0 %v1403
        %1435 = vmatpush1.bf16.msra.mxu0 %v1402
        %1436 = vmatprep.subr.bf16.mxu0 %v1405
        %1437 = vmatpush1.bf16.msra.mxu0 %v1404
        %1438 = vmatprep.subr.bf16.mxu0 %v1407
        %1439 = vmatpush1.bf16.msra.mxu0 %v1406
        %1440 = vmatprep.subr.bf16.mxu0 %v1409
        %1441 = vmatpush1.bf16.msra.mxu0 %v1408
        %1442 = vmatprep.subr.bf16.mxu0 %v1411
        %1443 = vmatpush1.bf16.msra.mxu0 %v1410
        %1444 = vmatprep.subr.bf16.mxu0 0
        %1445 = vmatpush1.bf16.msra.mxu0 0
        %1446 = vmatprep.subr.bf16.mxu0 0
        %1447 = vmatpush1.bf16.msra.mxu0 0
        %1448 = vmatprep.subr.bf16.mxu0 0
        %1449 = vmatpush1.bf16.msra.mxu0 0
        %1450 = vmatprep.subr.bf16.mxu0 0
        %1451 = vmatpush1.bf16.msra.mxu0 0
        %1452 = vmatprep.subr.bf16.mxu0 0
        %1453 = vmatpush1.bf16.msra.mxu0 0
        %1454 = vmatprep.subr.bf16.mxu0 0
        %1455 = vmatpush1.bf16.msra.mxu0 0
        %1456 = vmatprep.subr.bf16.mxu0 0
        %1457 = vmatpush1.bf16.msra.mxu0 0
        %1458 = vmatprep.subr.bf16.mxu0 0
        %1459 = vmatpush1.bf16.msra.mxu0 0
        %1460 = vmatprep.mubr.bf16.mxu0 0
        %1461 = vmatmul.mubr.bf16.gmra.mrb[0].mxu0 %v1319
        %v1462 = vpop.f32.mrb[0].mxu0
        %v1463 = vadd.f32 %v1341, %v1462
        %v1464 = vpop.f32.mrb[0].mxu0
        %v1465 = vadd.f32 %v1345, %v1464
        %v1466 = vpop.f32.mrb[0].mxu0
        %v1467 = vadd.f32 %v1341, %v1466
        %v1468 = vpop.f32.mrb[0].mxu0
        %v1469 = vadd.f32 %v1345, %v1468
        %1470 = vdwg.mxu0
        %v1471 = vmax.f32 %v1463, 0.0
        %v1472 = vmax.f32 %v1465, 0.0
        %v1473 = vmax.f32 %v1467, 0.0
        %v1474 = vmax.f32 %v1469, 0.0
        %v1475 = vpack.c.bf16 %v1473, %v1471
        %v1476 = vpack.c.bf16 %v1474, %v1472
        %v1477 = vld [vmem:[#allocation8] sm:$0xf]
        %v1478 = vld [vmem:[#allocation8 + $0x4] sm:$0xf]
        %v1479 = vld [vmem:[#allocation8 + $0x8] sm:$0xf]
        %v1480 = vld [vmem:[#allocation8 + $0xc] sm:$0xf]
        %v1481 = vld [vmem:[#allocation8 + $0x10] sm:$0xf]
        %v1482 = vld [vmem:[#allocation8 + $0x14] sm:$0xf]
        %v1483 = vld [vmem:[#allocation8 + $0x18] sm:$0xf]
        %v1484 = vld [vmem:[#allocation8 + $0x1c] sm:$0xf]
        %v1485 = vld [vmem:[#allocation8 + $0x20] sm:$0xf]
        %v1486 = vld [vmem:[#allocation8 + $0x24] sm:$0xf]
        %v1487 = vld [vmem:[#allocation8 + $0x28] sm:$0xf]
        %v1488 = vld [vmem:[#allocation8 + $0x2c] sm:$0xf]
        %v1489 = vld [vmem:[#allocation8 + $0x30] sm:$0xf]
        %v1490 = vld [vmem:[#allocation8 + $0x34] sm:$0xf]
        %v1491 = vld [vmem:[#allocation8 + $0x38] sm:$0xf]
        %v1492 = vld [vmem:[#allocation8 + $0x3c] sm:$0xf]
        %v1493 = vld [vmem:[#allocation8 + $0x40] sm:$0xf]
        %v1494 = vld [vmem:[#allocation8 + $0x44] sm:$0xf]
        %v1495 = vld [vmem:[#allocation8 + $0x48] sm:$0xf]
        %v1496 = vld [vmem:[#allocation8 + $0x4c] sm:$0xf]
        %v1497 = vld [vmem:[#allocation8 + $0x50] sm:$0xf]
        %v1498 = vld [vmem:[#allocation8 + $0x54] sm:$0xf]
        %v1499 = vld [vmem:[#allocation8 + $0x58] sm:$0xf]
        %v1500 = vld [vmem:[#allocation8 + $0x5c] sm:$0xf]
        %v1501 = vld [vmem:[#allocation8 + $0x60] sm:$0xf]
        %v1502 = vld [vmem:[#allocation8 + $0x64] sm:$0xf]
        %v1503 = vld [vmem:[#allocation8 + $0x68] sm:$0xf]
        %v1504 = vld [vmem:[#allocation8 + $0x6c] sm:$0xf]
        %v1505 = vld [vmem:[#allocation8 + $0x70] sm:$0xf]
        %v1506 = vld [vmem:[#allocation8 + $0x74] sm:$0xf]
        %v1507 = vld [vmem:[#allocation8 + $0x78] sm:$0xf]
        %v1508 = vld [vmem:[#allocation8 + $0x7c] sm:$0xf]
        %v1509 = vlaneseq
        %v1510 = vshrl.u32 %v1509, 7
        %v1511 = vsub.s32 3, %v1510
        %v1512 = vrot.slane %v385, %v1511
        %v1545 = vunpack.c.l.b16 %v1477
        %v1546 = vunpack.c.l.b16 %v1478
        %v1547 = vunpack.c.l.b16 %v1479
        %v1548 = vunpack.c.l.b16 %v1480
        %v1549 = vunpack.c.l.b16 %v1481
        %v1550 = vunpack.c.l.b16 %v1482
        %v1551 = vunpack.c.l.b16 %v1483
        %v1552 = vunpack.c.l.b16 %v1484
        %v1553 = vunpack.c.l.b16 %v1485
        %v1554 = vunpack.c.l.b16 %v1486
        %v1555 = vunpack.c.l.b16 %v1487
        %v1556 = vunpack.c.l.b16 %v1488
        %v1557 = vunpack.c.l.b16 %v1489
        %v1558 = vunpack.c.l.b16 %v1490
        %v1559 = vunpack.c.l.b16 %v1491
        %v1560 = vunpack.c.l.b16 %v1492
        %v1561 = vunpack.c.l.b16 %v1493
        %v1562 = vunpack.c.l.b16 %v1494
        %v1563 = vunpack.c.l.b16 %v1495
        %v1564 = vunpack.c.l.b16 %v1496
        %v1565 = vunpack.c.l.b16 %v1497
        %v1566 = vunpack.c.l.b16 %v1498
        %v1567 = vunpack.c.l.b16 %v1499
        %v1568 = vunpack.c.l.b16 %v1500
        %v1569 = vunpack.c.l.b16 %v1501
        %v1570 = vunpack.c.l.b16 %v1502
        %v1571 = vunpack.c.l.b16 %v1503
        %v1572 = vunpack.c.l.b16 %v1504
        %v1573 = vunpack.c.l.b16 %v1505
        %v1574 = vunpack.c.l.b16 %v1506
        %v1575 = vunpack.c.l.b16 %v1507
        %v1576 = vunpack.c.l.b16 %v1508
        %v1577 = vpack.c.b16 %v1546, %v1545
        %v1578 = vpack.c.b16 %v1548, %v1547
        %v1579 = vpack.c.b16 %v1550, %v1549
        %v1580 = vpack.c.b16 %v1552, %v1551
        %v1581 = vpack.c.b16 %v1554, %v1553
        %v1582 = vpack.c.b16 %v1556, %v1555
        %v1583 = vpack.c.b16 %v1558, %v1557
        %v1584 = vpack.c.b16 %v1560, %v1559
        %v1585 = vpack.c.b16 %v1562, %v1561
        %v1586 = vpack.c.b16 %v1564, %v1563
        %v1587 = vpack.c.b16 %v1566, %v1565
        %v1588 = vpack.c.b16 %v1568, %v1567
        %v1589 = vpack.c.b16 %v1570, %v1569
        %v1590 = vpack.c.b16 %v1572, %v1571
        %v1591 = vpack.c.b16 %v1574, %v1573
        %v1592 = vpack.c.b16 %v1576, %v1575
        %1609 = vmatprep.subr.bf16.mxu0 0
        %1610 = vmatpush1.bf16.msra.mxu0 %v1577
        %1611 = vmatprep.subr.bf16.mxu0 0
        %1612 = vmatpush1.bf16.msra.mxu0 %v1578
        %1613 = vmatprep.subr.bf16.mxu0 0
        %1614 = vmatpush1.bf16.msra.mxu0 %v1579
        %1615 = vmatprep.subr.bf16.mxu0 0
        %1616 = vmatpush1.bf16.msra.mxu0 %v1580
        %1617 = vmatprep.subr.bf16.mxu0 0
        %1618 = vmatpush1.bf16.msra.mxu0 %v1581
        %1619 = vmatprep.subr.bf16.mxu0 0
        %1620 = vmatpush1.bf16.msra.mxu0 %v1582
        %1621 = vmatprep.subr.bf16.mxu0 0
        %1622 = vmatpush1.bf16.msra.mxu0 %v1583
        %1623 = vmatprep.subr.bf16.mxu0 0
        %1624 = vmatpush1.bf16.msra.mxu0 %v1584
        %1625 = vmatprep.subr.bf16.mxu0 0
        %1626 = vmatpush1.bf16.msra.mxu0 %v1585
        %1627 = vmatprep.subr.bf16.mxu0 0
        %1628 = vmatpush1.bf16.msra.mxu0 %v1586
        %1629 = vmatprep.subr.bf16.mxu0 0
        %1630 = vmatpush1.bf16.msra.mxu0 %v1587
        %1631 = vmatprep.subr.bf16.mxu0 0
        %1632 = vmatpush1.bf16.msra.mxu0 %v1588
        %1633 = vmatprep.subr.bf16.mxu0 0
        %1634 = vmatpush1.bf16.msra.mxu0 %v1589
        %1635 = vmatprep.subr.bf16.mxu0 0
        %1636 = vmatpush1.bf16.msra.mxu0 %v1590
        %1637 = vmatprep.subr.bf16.mxu0 0
        %1638 = vmatpush1.bf16.msra.mxu0 %v1591
        %1639 = vmatprep.subr.bf16.mxu0 0
        %1640 = vmatpush1.bf16.msra.mxu0 %v1592
        %1641 = vmatprep.mubr.bf16.mxu0 %v1476
        %1642 = vmatmul.mubr.bf16.gmra.mrb[0].mxu0 %v1475
        %v1643 = vpop.f32.mrb[0].mxu0
        %v1644 = vadd.f32 %v1512, %v1643
        %v1645 = vpop.f32.mrb[0].mxu0
        %v1646 = vpop.f32.mrb[0].mxu0
        %v1647 = vadd.f32 %v1512, %v1646
        %v1648 = vpop.f32.mrb[0].mxu0
        %1649 = vdwg.mxu0
        %v1650 = vadd.f32 %v1317, %v1644
        %v1651 = vadd.f32 %v1318, %v1647
        %1652 = vadd.xlane.f32.xlu0 %v1650
        %v1653 = vpop.xlane.xlu0 %1652
        %1654 = vadd.xlane.f32.xlu0 %v1651
        %v1655 = vpop.xlane.xlu0 %1654
        %v1656 = vmul.f32 %v1653, %v1288
        %v1657 = vmul.f32 %v1655, %v1288
        %v1658 = vsub.f32 %v1650, %v1656
        %v1659 = vsub.f32 %v1651, %v1657
        %v1660 = vmul.f32 %v1658, %v1658
        %v1661 = vmul.f32 %v1659, %v1659
        %1662 = vadd.xlane.f32.xlu0 %v1660
        %v1663 = vpop.xlane.xlu0 %1662
        %1664 = vadd.xlane.f32.xlu0 %v1661
        %v1665 = vpop.xlane.xlu0 %1664
        %v1666 = vmul.f32 %v1663, %v1288
        %v1667 = vmul.f32 %v1665, %v1288
        %v1668 = vadd.f32 %v1666, 1e-05
        %v1669 = vadd.f32 %v1667, 1e-05
        %v1670 = vrsqrt.pop %v1668
        %v1671 = vrsqrt.pop %v1669
        %v1672 = vmul.f32 %v1658, %v1670
        %v1673 = vmul.f32 %v1659, %v1671
        %v1674 = vlaneseq
        %v1675 = vshrl.u32 %v1674, 7
        %v1676 = vsub.s32 4, %v1675
        %v1677 = vrot.slane %v385, %v1676
        %v1678 = vmul.f32 %v1672, %v1677
        %v1679 = vmul.f32 %v1673, %v1677
        %v1680 = vlaneseq
        %v1681 = vshrl.u32 %v1680, 7
        %v1682 = vsub.s32 5, %v1681
        %v1683 = vrot.slane %v385, %v1682
        %v1684 = vadd.f32 %v1678, %v1683
        %v1685 = vadd.f32 %v1679, %v1683
        %1686 = vst [vmem:[%s381] sm:$0xff] %v1684
        %1687 = vst [vmem:[%s381 + $0x8] sm:$0xff] %v1685
        %s1688 = sand.u32 %s202, 1
        %s1689 = sand.u32 %s202, 1
        %s1690 = smul.addr %s1689, 16
        %s1691 = scalar_lea.vmem [#allocation9], %s1690
        // Predicated region
        $region103: #{transformer_block.1} parent=85 // pred_check
          %p1692 = pneg %p212
        $region104: #{transformer_block.1} parent=85 // pred_check_branch
          %1694 = sbr.rel (%p1692) target = $region106
        $region105: #{transformer_block.1} parent=85 // pred_region
          %s1695 = smul.addr %s21, 8
          %s1696 = scalar_lea.vmem %s8, %s1695
          // Predicated region
          $region107: #{transformer_block.1} parent=105 // pred_check
            _
          $region108: #{transformer_block.1} parent=105 // pred_check_branch
            %1698 = sbr.rel (0) target = $region110
          $region109: #{transformer_block.1} parent=105 // pred_region
            // Predicated region
            $region111: #{transformer_block.1} parent=109 // pred_check
              _
            $region112: #{transformer_block.1} parent=109 // pred_check_branch
              %1700 = sbr.rel (0) target = $region114
            $region113: #{transformer_block.1} parent=109 // pred_region
              // Predicated region
              $region126: #{transformer_block.1} parent=113 // pred_check
                _
              $region127: #{transformer_block.1} parent=113 // pred_check_branch
                %1717 = sbr.rel (0) target = $region129
              $region128: #{transformer_block.1} parent=113 // pred_region
                loop: start=0, step=1, limit=1
                $region130: #{transformer_block.1} parent=128 // loop_pre_header
                  _
                $region131: #{transformer_block.1} parent=128 // loop_header
                  %s1719 = sphi 0, %s1723
                  %p1720 = scmp.ge.s32.totalorder %s1719, 1
                  %s1724 = sphi %s1691, %s1691
                  %s1725 = sphi %s1696, %s1696
                $region132: #{transformer_block.1} parent=128 // loop_header_branch
                  %1722 = sbr.rel (%p1720) target = $region136
                $region133: #{transformer_block.1} parent=128 // loop_body
                  %v1726 = vld [vmem:[%s1724] sm:$0xff]
                  %1727 = vst [vmem:[%s1725] sm:$0xff] %v1726
                  %v1728 = vld [vmem:[%s1724 + $0x8] sm:$0xff]
                  %1729 = vst [vmem:[%s1725 + $0x10] sm:$0xff] %v1728
                $region134: #{transformer_block.1} parent=128 // loop_footer
                  %s1723 = sadd.s32 1, %s1719
                $region135: #{transformer_block.1} parent=128 // loop_footer_branch
                  %1718 = sbr.rel target = $region131
                $region136: #{transformer_block.1} parent=128 // loop_exit
                  _
              $region129: #{transformer_block.1} parent=113 // pred_fallthru
                _
              // Predicated region
              $region137: #{transformer_block.1} parent=113 // pred_check
                _
              $region138: #{transformer_block.1} parent=113 // pred_check_branch
                %1731 = sbr.rel target = $region140
              $region139: #{transformer_block.1} parent=113 // pred_region
                _
              $region140: #{transformer_block.1} parent=113 // pred_fallthru
                _
            $region114: #{transformer_block.1} parent=109 // pred_fallthru
              _
            // Predicated region
            $region115: #{transformer_block.1} parent=109 // pred_check
              _
            $region116: #{transformer_block.1} parent=109 // pred_check_branch
              %1702 = sbr.rel target = $region118
            $region117: #{transformer_block.1} parent=109 // pred_region
              loop: start=0, step=1, limit=1
              $region119: #{transformer_block.1} parent=117 // loop_pre_header
                _
              $region120: #{transformer_block.1} parent=117 // loop_header
                %s1705 = sphi 0, %s1709
                %p1706 = scmp.ge.s32.totalorder %s1705, 1
                %s1710 = sphi %s1691, %s1691
                %s1711 = sphi %s1696, %s1696
              $region121: #{transformer_block.1} parent=117 // loop_header_branch
                %1708 = sbr.rel (%p1706) target = $region125
              $region122: #{transformer_block.1} parent=117 // loop_body
                %v1712 = vld [vmem:[%s1710] sm:$0xff]
                %1713 = vst [vmem:[%s1711] sm:$0xff] %v1712
                %v1714 = vld [vmem:[%s1710 + $0x8] sm:$0xff]
                %1715 = vst [vmem:[%s1711 + $0x10] sm:$0xff] %v1714
              $region123: #{transformer_block.1} parent=117 // loop_footer
                %s1709 = sadd.s32 1, %s1705
              $region124: #{transformer_block.1} parent=117 // loop_footer_branch
                %1704 = sbr.rel target = $region120
              $region125: #{transformer_block.1} parent=117 // loop_exit
                _
            $region118: #{transformer_block.1} parent=109 // pred_fallthru
              _
          $region110: #{transformer_block.1} parent=105 // pred_fallthru
            _
          %1732 = vnop
        $region106: #{transformer_block.1} parent=85 // pred_fallthru
          _
      $region86: #{transformer_block.1} parent=5 // pred_fallthru
        _
      %p1733 = scmp.le.s32.totalorder 2, %s16
      // Predicated region
      $region141: #{transformer_block.1} parent=5 // pred_check
        %p1734 = pneg %p1733
      $region142: #{transformer_block.1} parent=5 // pred_check_branch
        %1736 = sbr.rel (%p1734) target = $region144
      $region143: #{transformer_block.1} parent=5 // pred_region
        %s1737 = ssub.s32 %s16, 2
        // Predicated region
        $region145: #{transformer_block.1} parent=143 // pred_check
          %p1738 = pneg %p218
        $region146: #{transformer_block.1} parent=143 // pred_check_branch
          %1740 = sbr.rel (%p1738) target = $region148
        $region147: #{transformer_block.1} parent=143 // pred_region
          %s1741 = sand.u32 %s203, 1
          %s1742 = sand.u32 %s203, 1
          %s1743 = smul.addr %s1742, 16
          %s1744 = scalar_lea.vmem [#allocation9], %s1743
        $region148: #{transformer_block.1} parent=143 // pred_fallthru
          _
      $region144: #{transformer_block.1} parent=5 // pred_fallthru
        _
    $region6: #{transformer_block.1} parent=1 // loop_footer
      %s20 = sadd.s32 1, %s16
    $region7: #{transformer_block.1} parent=1 // loop_footer_branch
      %15 = sbr.rel target = $region3
    $region8: #{transformer_block.1} parent=1 // loop_exit
      _
    %1745 = vsyncpa [#allocation5], 1
    %s1746 = scalar_lea.sflag [#allocation5], 1
    %1747 = vsyncpa %s1746, 1
    %1748 = vsyncpa [#allocation7], 1

</llo_original>
